<compile_context>
chip_gen: v7x
topology: tpu7x:2x2x1
jax: 0.10.0
libtpu: 0.0.40
codegen_flags: <defaults>
</compile_context>

<pallas_src>
import math

import jax
import jax.numpy as jnp
import numpy as np
from jax.experimental import pallas as pl
from jax.experimental.pallas import tpu as pltpu

# Small, self-consistent shapes. x is (B, T, C) = (batch, seq_len, hidden) —
# GPT2 hidden_states layout; projection weights are (in, out) like GPT2 Conv1D.
B, T, C, H = 2, 8, 32, 4
D = C // H                       # head_dim = 8
WORLD_SIZE = 1                   # all_to_all is identity in this regime


def _attn_kernel(x_ref, wqkv_ref, bqkv_ref, wo_ref, bo_ref, o_ref):
    # x_ref: (B*T, C)    wqkv_ref: (C, 3C)  (Q columns pre-scaled by 1/sqrt(D))
    # bqkv_ref: (1, 3C)  wo_ref: (C, C)     bo_ref: (1, C)    o_ref: (B*T, C)
    x = x_ref[...]                                                  # (B*T, C)

    # Fused QKV projection for the whole batch in one MXU matmul.
    qkv = jnp.dot(x, wqkv_ref[...],
                  preferred_element_type=jnp.float32) + bqkv_ref[...]   # (B*T, 3C)
    # Leading/sublane-aligned split only (no lane relayout): (B*T, 3C) -> (B, T, 3C)
    qkv = qkv.reshape(B, T, 3 * C)

    # Causal mask, built once (GPT2 masks with dtype.min), broadcast over B.
    qi = jax.lax.broadcasted_iota(jnp.int32, (1, T, T), 1)
    ki = jax.lax.broadcasted_iota(jnp.int32, (1, T, T), 2)
    causal = ki <= qi                                               # (1, T, T)
    mask_value = jnp.finfo(jnp.float32).min

    wo = wo_ref[...]                                                # (C, C)

    # c_proj bias folded into the accumulator init; head merge + c_proj fused:
    #   concat_h(ctx_h) @ Wo + bo == bo + sum_h ctx_h @ Wo[h*D:(h+1)*D, :]
    out = jnp.broadcast_to(bo_ref[...], (B * T, C)).astype(jnp.float32)

    # Static (unrolled) head loop; each step is batched over B.
    for h in range(H):
        qh = qkv[:, :, h * D:(h + 1) * D]                           # (B, T, D)
        kh = qkv[:, :, C + h * D:C + (h + 1) * D]                   # (B, T, D)
        vh = qkv[:, :, 2 * C + h * D:2 * C + (h + 1) * D]           # (B, T, D)

        # q already carries the 1/sqrt(D) scale (folded into the weights).
        s = jnp.einsum('btd,bsd->bts', qh, kh,
                       preferred_element_type=jnp.float32)          # (B, T, T)
        s = jnp.where(causal, s, mask_value)
        s = s - jnp.max(s, axis=-1, keepdims=True)
        p = jnp.exp(s)                                              # EUP
        p = p * pl.reciprocal(jnp.sum(p, axis=-1, keepdims=True), approx=False)

        ctx = jnp.einsum('bts,bsd->btd', p, vh,
                         preferred_element_type=jnp.float32)        # (B, T, D)

        out = out + jnp.dot(ctx.reshape(B * T, D), wo[h * D:(h + 1) * D, :],
                            preferred_element_type=jnp.float32)     # (B*T, C)

    o_ref[...] = out.astype(o_ref.dtype)


def attention_wrapper_forward(x, w_attn, b_attn, w_proj, b_proj):
    """x: (B, T, C) f32 -> (B, T, C) f32 (GPT2Attention under world_size=1 wrapper)."""
    # Fold the attention scale into the Q projection (one-time, outside the kernel).
    scale = 1.0 / math.sqrt(D)
    w_attn_s = w_attn.at[:, :C].multiply(scale)
    b_attn_s = b_attn.at[:C].multiply(scale)

    vmem = pl.BlockSpec(memory_space=pltpu.MemorySpace.VMEM)
    x2d = x.reshape(B * T, C)
    out2d = pl.pallas_call(
        _attn_kernel,
        out_shape=jax.ShapeDtypeStruct((B * T, C), jnp.float32),
        # No grid: single invocation, whole arrays resident in VMEM.
        in_specs=[vmem, vmem, vmem, vmem, vmem],
        out_specs=vmem,
    )(x2d, w_attn_s, b_attn_s.reshape(1, 3 * C), w_proj, b_proj.reshape(1, C))
    return out2d.reshape(B, T, C)


def _reference(x, w_attn, b_attn, w_proj, b_proj):
    """Pure-JAX reference of GPT2Attention forward (world_size=1 wrapper)."""
    qkv = jnp.einsum("btc,cd->btd", x, w_attn) + b_attn
    q, k, v = jnp.split(qkv, 3, axis=-1)

    def to_heads(t):
        return t.reshape(B, T, H, D).transpose(0, 2, 1, 3)  # (B, H, T, D)

    q, k, v = to_heads(q), to_heads(k), to_heads(v)
    s = jnp.einsum("bhqd,bhkd->bhqk", q, k) / math.sqrt(D)
    causal = jnp.tril(jnp.ones((T, T), dtype=bool))
    s = jnp.where(causal[None, None], s, jnp.finfo(jnp.float32).min)
    p = jax.nn.softmax(s, axis=-1)
    ctx = jnp.einsum("bhqk,bhkd->bhqd", p, v)
    ctx = ctx.transpose(0, 2, 1, 3).reshape(B, T, C)
    return jnp.einsum("btc,cd->btd", ctx, w_proj) + b_proj


if __name__ == "__main__":
    key = jax.random.PRNGKey(0)
    k_x, k_wa, k_ba, k_wp, k_bp = jax.random.split(key, 5)

    x = jax.random.normal(k_x, (B, T, C), dtype=jnp.float32)
    # Deterministic synthetic parameters (GPT2 Conv1D shapes: weight (in, out))
    w_attn = jax.random.normal(k_wa, (C, 3 * C), dtype=jnp.float32) * 0.02
    b_attn = jax.random.normal(k_ba, (3 * C,), dtype=jnp.float32) * 0.02
    w_proj = jax.random.normal(k_wp, (C, C), dtype=jnp.float32) * 0.02
    b_proj = jax.random.normal(k_bp, (C,), dtype=jnp.float32) * 0.02

    out = attention_wrapper_forward(x, w_attn, b_attn, w_proj, b_proj)
    out = jax.block_until_ready(out)

    ref = _reference(x, w_attn, b_attn, w_proj, b_proj)
    np.testing.assert_allclose(np.asarray(out), np.asarray(ref), rtol=1e-4, atol=1e-5)

    # TODO(synk): multi-device dist.all_to_all (world_size > 1) would need a
    # pltpu.make_async_remote_copy ring; at world_size=1 it is the identity.
    print("KERNEL_OK")
</pallas_src>

<mosaic_0001>
module attributes {stable_mosaic.version = 11 : i64} {
  func.func @_attn_kernel(%arg0: memref<16x32xf32, #tpu.memory_space<vmem>>, %arg1: memref<32x96xf32, #tpu.memory_space<vmem>>, %arg2: memref<1x96xf32, #tpu.memory_space<vmem>>, %arg3: memref<32x32xf32, #tpu.memory_space<vmem>>, %arg4: memref<1x32xf32, #tpu.memory_space<vmem>>, %arg5: memref<16x32xf32, #tpu.memory_space<vmem>>) attributes {dimension_semantics = [], scalar_prefetch = 0 : i64, scratch_operands = 0 : i64, tpu.core_type = #tpu.core_type<tc>} {
    %c0 = arith.constant 0 : index
    %c0_0 = arith.constant 0 : index
    %0 = vector.load %arg0[%c0, %c0_0] : memref<16x32xf32, #tpu.memory_space<vmem>>, vector<16x32xf32>
    %c0_1 = arith.constant 0 : index
    %c0_2 = arith.constant 0 : index
    %1 = vector.load %arg1[%c0_1, %c0_2] : memref<32x96xf32, #tpu.memory_space<vmem>>, vector<32x96xf32>
    %cst = arith.constant dense<0.000000e+00> : vector<16x96xf32>
    %2 = tpu.matmul %0, %1, %cst {dimension_numbers = #tpu.dot_dimension_numbers<[1], [0], [0], [1], [0, 0, 1, 1], [], []>} : vector<16x32xf32>, vector<32x96xf32>, vector<16x96xf32> -> vector<16x96xf32>
    %c0_3 = arith.constant 0 : index
    %c0_4 = arith.constant 0 : index
    %3 = vector.load %arg2[%c0_3, %c0_4] : memref<1x96xf32, #tpu.memory_space<vmem>>, vector<1x96xf32>
    %4 = vector.broadcast %3 : vector<1x96xf32> to vector<16x96xf32>
    %5 = arith.addf %2, %4 : vector<16x96xf32>
    %6 = vector.shape_cast %5 : vector<16x96xf32> to vector<2x8x96xf32>
    %7 = tpu.iota {dimensions = array<i32: 1>} : vector<1x8x8xi32>
    %8 = tpu.iota {dimensions = array<i32: 2>} : vector<1x8x8xi32>
    %9 = arith.cmpi sle, %8, %7 : vector<1x8x8xi32>
    %c0_5 = arith.constant 0 : index
    %c0_6 = arith.constant 0 : index
    %10 = vector.load %arg3[%c0_5, %c0_6] : memref<32x32xf32, #tpu.memory_space<vmem>>, vector<32x32xf32>
    %c0_7 = arith.constant 0 : index
    %c0_8 = arith.constant 0 : index
    %11 = vector.load %arg4[%c0_7, %c0_8] : memref<1x32xf32, #tpu.memory_space<vmem>>, vector<1x32xf32>
    %12 = vector.shape_cast %11 : vector<1x32xf32> to vector<1x32xf32>
    %13 = vector.broadcast %12 : vector<1x32xf32> to vector<16x32xf32>
    %14 = vector.extract_strided_slice %6 {offsets = [0, 0, 0], sizes = [2, 8, 8], strides = [1, 1, 1]} : vector<2x8x96xf32> to vector<2x8x8xf32>
    %15 = vector.extract_strided_slice %6 {offsets = [0, 0, 32], sizes = [2, 8, 8], strides = [1, 1, 1]} : vector<2x8x96xf32> to vector<2x8x8xf32>
    %16 = vector.extract_strided_slice %6 {offsets = [0, 0, 64], sizes = [2, 8, 8], strides = [1, 1, 1]} : vector<2x8x96xf32> to vector<2x8x8xf32>
    "tpu.trace_start"() <{level = 10 : i32, message = "btd,bsd->bts"}> : () -> ()
    %cst_9 = arith.constant dense<0.000000e+00> : vector<2x8x8xf32>
    %17 = tpu.matmul %14, %15, %cst_9 {dimension_numbers = #tpu.dot_dimension_numbers<[2], [2], [1], [1], [0, 0, 0, 1, 1, 1], [0], [0]>} : vector<2x8x8xf32>, vector<2x8x8xf32>, vector<2x8x8xf32> -> vector<2x8x8xf32>
    %cst_10 = arith.constant -3.40282347E+38 : f32
    "tpu.trace_stop"() : () -> ()
    %18 = vector.shape_cast %9 : vector<1x8x8xi1> to vector<1x8x8xi1>
    %19 = vector.broadcast %18 : vector<1x8x8xi1> to vector<2x8x8xi1>
    %20 = vector.broadcast %cst_10 : f32 to vector<2x8x8xf32>
    %21 = arith.select %19, %17, %20 : vector<2x8x8xi1>, vector<2x8x8xf32>
    %cst_11 = arith.constant dense<0xFF800000> : vector<2x8xf32>
    %22 = vector.multi_reduction <maximumf>, %21, %cst_11 [2] : vector<2x8x8xf32> to vector<2x8xf32>
    %23 = vector.shape_cast %22 : vector<2x8xf32> to vector<2x8x1xf32>
    %24 = vector.broadcast %23 : vector<2x8x1xf32> to vector<2x8x8xf32>
    %25 = arith.subf %21, %24 : vector<2x8x8xf32>
    %26 = math.exp %25 : vector<2x8x8xf32>
    %cst_12 = arith.constant dense<0.000000e+00> : vector<2x8xf32>
    %27 = vector.multi_reduction <add>, %26, %cst_12 [2] : vector<2x8x8xf32> to vector<2x8xf32>
    %28 = vector.shape_cast %27 : vector<2x8xf32> to vector<2x8x1xf32>
    %29 = tpu.reciprocal %28 : vector<2x8x1xf32> -> vector<2x8x1xf32>
    %30 = vector.broadcast %29 : vector<2x8x1xf32> to vector<2x8x8xf32>
    %31 = arith.mulf %26, %30 : vector<2x8x8xf32>
    "tpu.trace_start"() <{level = 10 : i32, message = "bts,bsd->btd"}> : () -> ()
    %cst_13 = arith.constant dense<0.000000e+00> : vector<2x8x8xf32>
    %32 = tpu.matmul %31, %16, %cst_13 {dimension_numbers = #tpu.dot_dimension_numbers<[2], [1], [1], [2], [0, 0, 0, 1, 1, 2], [0], [0]>} : vector<2x8x8xf32>, vector<2x8x8xf32>, vector<2x8x8xf32> -> vector<2x8x8xf32>
    "tpu.trace_stop"() : () -> ()
    %33 = vector.shape_cast %32 : vector<2x8x8xf32> to vector<16x8xf32>
    %34 = vector.extract_strided_slice %10 {offsets = [0, 0], sizes = [8, 32], strides = [1, 1]} : vector<32x32xf32> to vector<8x32xf32>
    %cst_14 = arith.constant dense<0.000000e+00> : vector<16x32xf32>
    %35 = tpu.matmul %33, %34, %cst_14 {dimension_numbers = #tpu.dot_dimension_numbers<[1], [0], [0], [1], [0, 0, 1, 1], [], []>} : vector<16x8xf32>, vector<8x32xf32>, vector<16x32xf32> -> vector<16x32xf32>
    %36 = arith.addf %13, %35 : vector<16x32xf32>
    %37 = vector.extract_strided_slice %6 {offsets = [0, 0, 8], sizes = [2, 8, 8], strides = [1, 1, 1]} : vector<2x8x96xf32> to vector<2x8x8xf32>
    %38 = vector.extract_strided_slice %6 {offsets = [0, 0, 40], sizes = [2, 8, 8], strides = [1, 1, 1]} : vector<2x8x96xf32> to vector<2x8x8xf32>
    %39 = vector.extract_strided_slice %6 {offsets = [0, 0, 72], sizes = [2, 8, 8], strides = [1, 1, 1]} : vector<2x8x96xf32> to vector<2x8x8xf32>
    "tpu.trace_start"() <{level = 10 : i32, message = "btd,bsd->bts"}> : () -> ()
    %cst_15 = arith.constant dense<0.000000e+00> : vector<2x8x8xf32>
    %40 = tpu.matmul %37, %38, %cst_15 {dimension_numbers = #tpu.dot_dimension_numbers<[2], [2], [1], [1], [0, 0, 0, 1, 1, 1], [0], [0]>} : vector<2x8x8xf32>, vector<2x8x8xf32>, vector<2x8x8xf32> -> vector<2x8x8xf32>
    %cst_16 = arith.constant -3.40282347E+38 : f32
    "tpu.trace_stop"() : () -> ()
    %41 = vector.shape_cast %9 : vector<1x8x8xi1> to vector<1x8x8xi1>
    %42 = vector.broadcast %41 : vector<1x8x8xi1> to vector<2x8x8xi1>
    %43 = vector.broadcast %cst_16 : f32 to vector<2x8x8xf32>
    %44 = arith.select %42, %40, %43 : vector<2x8x8xi1>, vector<2x8x8xf32>
    %cst_17 = arith.constant dense<0xFF800000> : vector<2x8xf32>
    %45 = vector.multi_reduction <maximumf>, %44, %cst_17 [2] : vector<2x8x8xf32> to vector<2x8xf32>
    %46 = vector.shape_cast %45 : vector<2x8xf32> to vector<2x8x1xf32>
    %47 = vector.broadcast %46 : vector<2x8x1xf32> to vector<2x8x8xf32>
    %48 = arith.subf %44, %47 : vector<2x8x8xf32>
    %49 = math.exp %48 : vector<2x8x8xf32>
    %cst_18 = arith.constant dense<0.000000e+00> : vector<2x8xf32>
    %50 = vector.multi_reduction <add>, %49, %cst_18 [2] : vector<2x8x8xf32> to vector<2x8xf32>
    %51 = vector.shape_cast %50 : vector<2x8xf32> to vector<2x8x1xf32>
    %52 = tpu.reciprocal %51 : vector<2x8x1xf32> -> vector<2x8x1xf32>
    %53 = vector.broadcast %52 : vector<2x8x1xf32> to vector<2x8x8xf32>
    %54 = arith.mulf %49, %53 : vector<2x8x8xf32>
    "tpu.trace_start"() <{level = 10 : i32, message = "bts,bsd->btd"}> : () -> ()
    %cst_19 = arith.constant dense<0.000000e+00> : vector<2x8x8xf32>
    %55 = tpu.matmul %54, %39, %cst_19 {dimension_numbers = #tpu.dot_dimension_numbers<[2], [1], [1], [2], [0, 0, 0, 1, 1, 2], [0], [0]>} : vector<2x8x8xf32>, vector<2x8x8xf32>, vector<2x8x8xf32> -> vector<2x8x8xf32>
    "tpu.trace_stop"() : () -> ()
    %56 = vector.shape_cast %55 : vector<2x8x8xf32> to vector<16x8xf32>
    %57 = vector.extract_strided_slice %10 {offsets = [8, 0], sizes = [8, 32], strides = [1, 1]} : vector<32x32xf32> to vector<8x32xf32>
    %cst_20 = arith.constant dense<0.000000e+00> : vector<16x32xf32>
    %58 = tpu.matmul %56, %57, %cst_20 {dimension_numbers = #tpu.dot_dimension_numbers<[1], [0], [0], [1], [0, 0, 1, 1], [], []>} : vector<16x8xf32>, vector<8x32xf32>, vector<16x32xf32> -> vector<16x32xf32>
    %59 = arith.addf %36, %58 : vector<16x32xf32>
    %60 = vector.extract_strided_slice %6 {offsets = [0, 0, 16], sizes = [2, 8, 8], strides = [1, 1, 1]} : vector<2x8x96xf32> to vector<2x8x8xf32>
    %61 = vector.extract_strided_slice %6 {offsets = [0, 0, 48], sizes = [2, 8, 8], strides = [1, 1, 1]} : vector<2x8x96xf32> to vector<2x8x8xf32>
    %62 = vector.extract_strided_slice %6 {offsets = [0, 0, 80], sizes = [2, 8, 8], strides = [1, 1, 1]} : vector<2x8x96xf32> to vector<2x8x8xf32>
    "tpu.trace_start"() <{level = 10 : i32, message = "btd,bsd->bts"}> : () -> ()
    %cst_21 = arith.constant dense<0.000000e+00> : vector<2x8x8xf32>
    %63 = tpu.matmul %60, %61, %cst_21 {dimension_numbers = #tpu.dot_dimension_numbers<[2], [2], [1], [1], [0, 0, 0, 1, 1, 1], [0], [0]>} : vector<2x8x8xf32>, vector<2x8x8xf32>, vector<2x8x8xf32> -> vector<2x8x8xf32>
    %cst_22 = arith.constant -3.40282347E+38 : f32
    "tpu.trace_stop"() : () -> ()
    %64 = vector.shape_cast %9 : vector<1x8x8xi1> to vector<1x8x8xi1>
    %65 = vector.broadcast %64 : vector<1x8x8xi1> to vector<2x8x8xi1>
    %66 = vector.broadcast %cst_22 : f32 to vector<2x8x8xf32>
    %67 = arith.select %65, %63, %66 : vector<2x8x8xi1>, vector<2x8x8xf32>
    %cst_23 = arith.constant dense<0xFF800000> : vector<2x8xf32>
    %68 = vector.multi_reduction <maximumf>, %67, %cst_23 [2] : vector<2x8x8xf32> to vector<2x8xf32>
    %69 = vector.shape_cast %68 : vector<2x8xf32> to vector<2x8x1xf32>
    %70 = vector.broadcast %69 : vector<2x8x1xf32> to vector<2x8x8xf32>
    %71 = arith.subf %67, %70 : vector<2x8x8xf32>
    %72 = math.exp %71 : vector<2x8x8xf32>
    %cst_24 = arith.constant dense<0.000000e+00> : vector<2x8xf32>
    %73 = vector.multi_reduction <add>, %72, %cst_24 [2] : vector<2x8x8xf32> to vector<2x8xf32>
    %74 = vector.shape_cast %73 : vector<2x8xf32> to vector<2x8x1xf32>
    %75 = tpu.reciprocal %74 : vector<2x8x1xf32> -> vector<2x8x1xf32>
    %76 = vector.broadcast %75 : vector<2x8x1xf32> to vector<2x8x8xf32>
    %77 = arith.mulf %72, %76 : vector<2x8x8xf32>
    "tpu.trace_start"() <{level = 10 : i32, message = "bts,bsd->btd"}> : () -> ()
    %cst_25 = arith.constant dense<0.000000e+00> : vector<2x8x8xf32>
    %78 = tpu.matmul %77, %62, %cst_25 {dimension_numbers = #tpu.dot_dimension_numbers<[2], [1], [1], [2], [0, 0, 0, 1, 1, 2], [0], [0]>} : vector<2x8x8xf32>, vector<2x8x8xf32>, vector<2x8x8xf32> -> vector<2x8x8xf32>
    "tpu.trace_stop"() : () -> ()
    %79 = vector.shape_cast %78 : vector<2x8x8xf32> to vector<16x8xf32>
    %80 = vector.extract_strided_slice %10 {offsets = [16, 0], sizes = [8, 32], strides = [1, 1]} : vector<32x32xf32> to vector<8x32xf32>
    %cst_26 = arith.constant dense<0.000000e+00> : vector<16x32xf32>
    %81 = tpu.matmul %79, %80, %cst_26 {dimension_numbers = #tpu.dot_dimension_numbers<[1], [0], [0], [1], [0, 0, 1, 1], [], []>} : vector<16x8xf32>, vector<8x32xf32>, vector<16x32xf32> -> vector<16x32xf32>
    %82 = arith.addf %59, %81 : vector<16x32xf32>
    %83 = vector.extract_strided_slice %6 {offsets = [0, 0, 24], sizes = [2, 8, 8], strides = [1, 1, 1]} : vector<2x8x96xf32> to vector<2x8x8xf32>
    %84 = vector.extract_strided_slice %6 {offsets = [0, 0, 56], sizes = [2, 8, 8], strides = [1, 1, 1]} : vector<2x8x96xf32> to vector<2x8x8xf32>
    %85 = vector.extract_strided_slice %6 {offsets = [0, 0, 88], sizes = [2, 8, 8], strides = [1, 1, 1]} : vector<2x8x96xf32> to vector<2x8x8xf32>
    "tpu.trace_start"() <{level = 10 : i32, message = "btd,bsd->bts"}> : () -> ()
    %cst_27 = arith.constant dense<0.000000e+00> : vector<2x8x8xf32>
    %86 = tpu.matmul %83, %84, %cst_27 {dimension_numbers = #tpu.dot_dimension_numbers<[2], [2], [1], [1], [0, 0, 0, 1, 1, 1], [0], [0]>} : vector<2x8x8xf32>, vector<2x8x8xf32>, vector<2x8x8xf32> -> vector<2x8x8xf32>
    %cst_28 = arith.constant -3.40282347E+38 : f32
    "tpu.trace_stop"() : () -> ()
    %87 = vector.shape_cast %9 : vector<1x8x8xi1> to vector<1x8x8xi1>
    %88 = vector.broadcast %87 : vector<1x8x8xi1> to vector<2x8x8xi1>
    %89 = vector.broadcast %cst_28 : f32 to vector<2x8x8xf32>
    %90 = arith.select %88, %86, %89 : vector<2x8x8xi1>, vector<2x8x8xf32>
    %cst_29 = arith.constant dense<0xFF800000> : vector<2x8xf32>
    %91 = vector.multi_reduction <maximumf>, %90, %cst_29 [2] : vector<2x8x8xf32> to vector<2x8xf32>
    %92 = vector.shape_cast %91 : vector<2x8xf32> to vector<2x8x1xf32>
    %93 = vector.broadcast %92 : vector<2x8x1xf32> to vector<2x8x8xf32>
    %94 = arith.subf %90, %93 : vector<2x8x8xf32>
    %95 = math.exp %94 : vector<2x8x8xf32>
    %cst_30 = arith.constant dense<0.000000e+00> : vector<2x8xf32>
    %96 = vector.multi_reduction <add>, %95, %cst_30 [2] : vector<2x8x8xf32> to vector<2x8xf32>
    %97 = vector.shape_cast %96 : vector<2x8xf32> to vector<2x8x1xf32>
    %98 = tpu.reciprocal %97 : vector<2x8x1xf32> -> vector<2x8x1xf32>
    %99 = vector.broadcast %98 : vector<2x8x1xf32> to vector<2x8x8xf32>
    %100 = arith.mulf %95, %99 : vector<2x8x8xf32>
    "tpu.trace_start"() <{level = 10 : i32, message = "bts,bsd->btd"}> : () -> ()
    %cst_31 = arith.constant dense<0.000000e+00> : vector<2x8x8xf32>
    %101 = tpu.matmul %100, %85, %cst_31 {dimension_numbers = #tpu.dot_dimension_numbers<[2], [1], [1], [2], [0, 0, 0, 1, 1, 2], [0], [0]>} : vector<2x8x8xf32>, vector<2x8x8xf32>, vector<2x8x8xf32> -> vector<2x8x8xf32>
    "tpu.trace_stop"() : () -> ()
    %102 = vector.shape_cast %101 : vector<2x8x8xf32> to vector<16x8xf32>
    %103 = vector.extract_strided_slice %10 {offsets = [24, 0], sizes = [8, 32], strides = [1, 1]} : vector<32x32xf32> to vector<8x32xf32>
    %cst_32 = arith.constant dense<0.000000e+00> : vector<16x32xf32>
    %104 = tpu.matmul %102, %103, %cst_32 {dimension_numbers = #tpu.dot_dimension_numbers<[1], [0], [0], [1], [0, 0, 1, 1], [], []>} : vector<16x8xf32>, vector<8x32xf32>, vector<16x32xf32> -> vector<16x32xf32>
    %105 = arith.addf %82, %104 : vector<16x32xf32>
    %c0_33 = arith.constant 0 : index
    %c0_34 = arith.constant 0 : index
    %106 = vector.load %arg5[%c0_33, %c0_34] : memref<16x32xf32, #tpu.memory_space<vmem>>, vector<16x32xf32>
    tpu.vector_store %arg5[%c0_33, %c0_34], %105 {strides = array<i32>} : memref<16x32xf32, #tpu.memory_space<vmem>>, vector<16x32xf32>,
    return
  }
}

</mosaic_0001>

<llo_original>
// kernel: tpu_custom_call.1
$region0: #{tpu_custom_call.1}
  #allocation0 [shape = 'u32[]', space=smem, size = 0x4, offset = 0x4, fixed_abs, tag = 'smem constant byte address 0x4 - core index']
  #allocation1 [shape = 'u32[144,128]{1,0:T(1,128)}', space=vmem, size = 0x12000, scoped, tag = 'internal scratch']
  %s0 = inlined_call_operand.hbm [shape: f32[16,32], index: 0, kind: input, shape index: {}]
  %s1 = inlined_call_operand.hbm [shape: f32[32,96], index: 1, kind: input, shape index: {}]
  %s2 = inlined_call_operand.vmem [shape: f32[1,96], index: 2, kind: input, shape index: {}]
  %s3 = inlined_call_operand.hbm [shape: f32[32,32], index: 3, kind: input, shape index: {}]
  %s4 = inlined_call_operand.vmem [shape: f32[1,32], index: 4, kind: input, shape index: {}]
  %s5 = inlined_call_operand.hbm [shape: f32[16,32], index: 5, kind: output, shape index: {}]
  %s6 = sld [smem:[#allocation0]]
  $region42: #{tpu_custom_call.1} parent=0
    _
  %s8 = ssub.s32 1, %s6
  %s9 = scalar_select 0, %s8, %s6
  $region1: #{tpu_custom_call.1} parent=0
    #allocation2 [shape = 'u8[8192]{0}', space=vmem, size = 0x2000, scoped, tag = 'input window, operand 0, single buffered']
    #allocation3 [shape = 's32[1]{0}', space=sflag, size = 0x4, scoped, tag = 'scoped memory for tpu_custom_call.1']
    #allocation4 [shape = 's32[1]{0}', space=sflag, size = 0x4, scoped, tag = 'scoped memory for tpu_custom_call.1']
    #allocation5 [shape = 'u8[16384]{0}', space=vmem, size = 0x4000, scoped, tag = 'input window, operand 1, single buffered']
    #allocation6 [shape = 's32[1]{0}', space=sflag, size = 0x4, scoped, tag = 'scoped memory for tpu_custom_call.1']
    #allocation7 [shape = 'u8[16384]{0}', space=vmem, size = 0x4000, scoped, tag = 'input window, operand 3, single buffered']
    #allocation8 [shape = 'u8[8192]{0}', space=vmem, size = 0x2000, scoped, tag = 'output window, operand 0, single buffered']
    %10 = vsyncpa [#allocation3], 0
    %11 = vsyncpa [#allocation6], 0
    %12 = vsyncpa [#allocation4], 0
    // Predicated region
    $region2: #{tpu_custom_call.1} parent=1 // pred_check
      _
    $region3: #{tpu_custom_call.1} parent=1 // pred_check_branch
      %14 = sbr.rel (0) target = $region5
    $region4: #{tpu_custom_call.1} parent=1 // pred_region
      %s16 = ssub.s32 256, 256
      %17 = vsyncadd [#allocation3], %s16
      %s18 = sshll.u32 [#allocation2], 4
      %s19 = int_to_ptr.vmem [resolvable:$true] %s18
      %24 = dma.hbm_to_vmem [thread:$0]  %s0, 256, %s19, [#allocation3], 128, 128, 8
    $region5: #{tpu_custom_call.1} parent=1 // pred_fallthru
      _
    // Predicated region
    $region6: #{tpu_custom_call.1} parent=1 // pred_check
      _
    $region7: #{tpu_custom_call.1} parent=1 // pred_check_branch
      %26 = sbr.rel (0) target = $region9
    $region8: #{tpu_custom_call.1} parent=1 // pred_region
      %s28 = ssub.s32 512, 512
      %29 = vsyncadd [#allocation6], %s28
      %s30 = sshll.u32 [#allocation5], 4
      %s31 = int_to_ptr.vmem [resolvable:$true] %s30
      %36 = dma.hbm_to_vmem [thread:$0]  %s1, 512, %s31, [#allocation6], 128, 128, 8
    $region9: #{tpu_custom_call.1} parent=1 // pred_fallthru
      _
    // Predicated region
    $region10: #{tpu_custom_call.1} parent=1 // pred_check
      _
    $region11: #{tpu_custom_call.1} parent=1 // pred_check_branch
      %38 = sbr.rel (0) target = $region13
    $region12: #{tpu_custom_call.1} parent=1 // pred_region
      _
    $region13: #{tpu_custom_call.1} parent=1 // pred_fallthru
      _
    // Predicated region
    $region14: #{tpu_custom_call.1} parent=1 // pred_check
      _
    $region15: #{tpu_custom_call.1} parent=1 // pred_check_branch
      %40 = sbr.rel (0) target = $region17
    $region16: #{tpu_custom_call.1} parent=1 // pred_region
      %s42 = ssub.s32 512, 512
      %43 = vsyncadd [#allocation6], %s42
      %s44 = sshll.u32 [#allocation7], 4
      %s45 = int_to_ptr.vmem [resolvable:$true] %s44
      %50 = dma.hbm_to_vmem [thread:$0]  %s3, 512, %s45, [#allocation6], 128, 128, 8
    $region17: #{tpu_custom_call.1} parent=1 // pred_fallthru
      _
    // Predicated region
    $region18: #{tpu_custom_call.1} parent=1 // pred_check
      _
    $region19: #{tpu_custom_call.1} parent=1 // pred_check_branch
      %52 = sbr.rel (0) target = $region21
    $region20: #{tpu_custom_call.1} parent=1 // pred_region
      _
    $region21: #{tpu_custom_call.1} parent=1 // pred_fallthru
      _
    // Predicated region
    $region22: #{tpu_custom_call.1} parent=1 // pred_check
      _
    $region23: #{tpu_custom_call.1} parent=1 // pred_check_branch
      %54 = sbr.rel (0) target = $region25
    $region24: #{tpu_custom_call.1} parent=1 // pred_region
      %55 = dma.done [#allocation3], 256
    $region25: #{tpu_custom_call.1} parent=1 // pred_fallthru
      _
    // Predicated region
    $region26: #{tpu_custom_call.1} parent=1 // pred_check
      _
    $region27: #{tpu_custom_call.1} parent=1 // pred_check_branch
      %57 = sbr.rel (0) target = $region29
    $region28: #{tpu_custom_call.1} parent=1 // pred_region
      %58 = dma.done [#allocation6], 512
    $region29: #{tpu_custom_call.1} parent=1 // pred_fallthru
      _
    // Predicated region
    $region30: #{tpu_custom_call.1} parent=1 // pred_check
      _
    $region31: #{tpu_custom_call.1} parent=1 // pred_check_branch
      %60 = sbr.rel (0) target = $region33
    $region32: #{tpu_custom_call.1} parent=1 // pred_region
      %61 = dma.done [#allocation6], 512
    $region33: #{tpu_custom_call.1} parent=1 // pred_fallthru
      _
    %v62 = vld [vmem:[#allocation2] sm:$0xff]
    %v63 = vld [vmem:[#allocation2 + $0x8] sm:$0xff]
    %v64 = vld [vmem:[#allocation5] sm:$0xff]
    %v65 = vld [vmem:[#allocation5 + $0x8] sm:$0xff]
    %v66 = vld [vmem:[#allocation5 + $0x10] sm:$0xff]
    %v67 = vld [vmem:[#allocation5 + $0x18] sm:$0xff]
    %v68 = vld [vmem:[%s2] sm:$0x1]
    %v70 = vlaneseq
    %v71 = vshrl.u32 %v70, 7
    %v72 = vsub.s32 0, %v71
    %v73 = vrot.slane %v68, %v72
    %vm75 = vcmask 261120
    %v77 = vsel %vm75, %v62, 0
    %v80 = vsel %vm75, %v63, 0
    %82 = vmatprep.subr.mxu0 0.0
    %83 = vmatpush1.msra.mxu0 %v64
    %84 = vmatprep.subr.mxu0 0.0
    %85 = vmatpush1.msra.mxu0 %v65
    %86 = vmatprep.subr.mxu0 0.0
    %87 = vmatpush1.msra.mxu0 %v66
    %88 = vmatprep.subr.mxu0 0.0
    %89 = vmatpush1.msra.mxu0 %v67
    %90 = vmatprep.subr.mxu0 0.0
    %91 = vmatpush1.msra.mxu0 0.0
    %92 = vmatprep.subr.mxu0 0.0
    %93 = vmatpush1.msra.mxu0 0.0
    %94 = vmatprep.subr.mxu0 0.0
    %95 = vmatpush1.msra.mxu0 0.0
    %96 = vmatprep.subr.mxu0 0.0
    %97 = vmatpush1.msra.mxu0 0.0
    %98 = vmatprep.subr.mxu0 0.0
    %99 = vmatpush1.msra.mxu0 0.0
    %100 = vmatprep.subr.mxu0 0.0
    %101 = vmatpush1.msra.mxu0 0.0
    %102 = vmatprep.subr.mxu0 0.0
    %103 = vmatpush1.msra.mxu0 0.0
    %104 = vmatprep.subr.mxu0 0.0
    %105 = vmatpush1.msra.mxu0 0.0
    %106 = vmatprep.subr.mxu0 0.0
    %107 = vmatpush1.msra.mxu0 0.0
    %108 = vmatprep.subr.mxu0 0.0
    %109 = vmatpush1.msra.mxu0 0.0
    %110 = vmatprep.subr.mxu0 0.0
    %111 = vmatpush1.msra.mxu0 0.0
    %112 = vmatprep.subr.mxu0 0.0
    %113 = vmatpush1.msra.mxu0 0.0
    %114 = vmatprep.subr.mxu0 0.0
    %115 = vmatpush1.msra.mxu0 0.0
    %116 = vmatprep.subr.mxu0 0.0
    %117 = vmatpush1.msra.mxu0 0.0
    %118 = vmatprep.subr.mxu0 0.0
    %119 = vmatpush1.msra.mxu0 0.0
    %120 = vmatprep.subr.mxu0 0.0
    %121 = vmatpush1.msra.mxu0 0.0
    %122 = vmatprep.subr.mxu0 0.0
    %123 = vmatpush1.msra.mxu0 0.0
    %124 = vmatprep.subr.mxu0 0.0
    %125 = vmatpush1.msra.mxu0 0.0
    %126 = vmatprep.subr.mxu0 0.0
    %127 = vmatpush1.msra.mxu0 0.0
    %128 = vmatprep.subr.mxu0 0.0
    %129 = vmatpush1.msra.mxu0 0.0
    %130 = vmatprep.subr.mxu0 0.0
    %131 = vmatpush1.msra.mxu0 0.0
    %132 = vmatprep.subr.mxu0 0.0
    %133 = vmatpush1.msra.mxu0 0.0
    %134 = vmatprep.subr.mxu0 0.0
    %135 = vmatpush1.msra.mxu0 0.0
    %136 = vmatprep.subr.mxu0 0.0
    %137 = vmatpush1.msra.mxu0 0.0
    %138 = vmatprep.subr.mxu0 0.0
    %139 = vmatpush1.msra.mxu0 0.0
    %140 = vmatprep.subr.mxu0 0.0
    %141 = vmatpush1.msra.mxu0 0.0
    %142 = vmatprep.subr.mxu0 0.0
    %143 = vmatpush1.msra.mxu0 0.0
    %144 = vmatprep.subr.mxu0 0.0
    %145 = vmatpush1.msra.mxu0 0.0
    %146 = vmatprep.mubr.f32.mxu0 0.0
    %147 = vmatmul.mubr.f32.gmra.mrb[0].mxu0 %v77
    %v148 = vpop.f32.mrb[0].mxu0
    %v149 = vadd.f32 %v73, %v148
    %v150 = vpop.f32.mrb[0].mxu0
    %151 = vmatprep.mubr.f32.mxu0 0.0
    %152 = vmatmul.mubr.f32.gmra.mrb[0].mxu0 %v80
    %v153 = vpop.f32.mrb[0].mxu0
    %v154 = vadd.f32 %v73, %v153
    %v155 = vpop.f32.mrb[0].mxu0
    %156 = vdwg.mxu0
    %v157 = vlaneseq
    %v158 = vshrl.u32 %v157, 7
    %v159 = vlaneseq
    %v160 = vand.u32 %v159, 127
    %vm161 = vcmp.le.s32.totalorder %v160, %v158
    %v162 = vld [vmem:[#allocation7] sm:$0xff]
    %v163 = vld [vmem:[#allocation7 + $0x8] sm:$0xff]
    %v164 = vld [vmem:[#allocation7 + $0x10] sm:$0xff]
    %v165 = vld [vmem:[#allocation7 + $0x18] sm:$0xff]
    %v166 = vld [vmem:[%s4] sm:$0x1]
    %v168 = vlaneseq
    %v169 = vshrl.u32 %v168, 7
    %v170 = vsub.s32 0, %v169
    %v171 = vrot.slane %v166, %v170
    %174 = vrot.lane.b32.xlu0 %v149, 96
    %v175 = vpop.permute.xlu0 %174
    %vm176 = vcmask 64512
    %v177 = vsel %vm176, %v149, 0
    %v179 = vsel %vm176, %v175, 0
    %181 = vmatprep.subr.mxu0 0.0
    %182 = vmatpush1.xpose.msra.mxu0 %v179
    %183 = vmatprep.subr.mxu0 0.0
    %184 = vmatpush1.xpose.msra.mxu0 0.0
    %185 = vmatprep.subr.mxu0 0.0
    %186 = vmatpush1.xpose.msra.mxu0 0.0
    %187 = vmatprep.subr.mxu0 0.0
    %188 = vmatpush1.xpose.msra.mxu0 0.0
    %189 = vmatprep.subr.mxu0 0.0
    %190 = vmatpush1.xpose.msra.mxu0 0.0
    %191 = vmatprep.subr.mxu0 0.0
    %192 = vmatpush1.xpose.msra.mxu0 0.0
    %193 = vmatprep.subr.mxu0 0.0
    %194 = vmatpush1.xpose.msra.mxu0 0.0
    %195 = vmatprep.subr.mxu0 0.0
    %196 = vmatpush1.xpose.msra.mxu0 0.0
    %197 = vmatprep.subr.mxu0 0.0
    %198 = vmatpush1.xpose.msra.mxu0 0.0
    %199 = vmatprep.subr.mxu0 0.0
    %200 = vmatpush1.xpose.msra.mxu0 0.0
    %201 = vmatprep.subr.mxu0 0.0
    %202 = vmatpush1.xpose.msra.mxu0 0.0
    %203 = vmatprep.subr.mxu0 0.0
    %204 = vmatpush1.xpose.msra.mxu0 0.0
    %205 = vmatprep.subr.mxu0 0.0
    %206 = vmatpush1.xpose.msra.mxu0 0.0
    %207 = vmatprep.subr.mxu0 0.0
    %208 = vmatpush1.xpose.msra.mxu0 0.0
    %209 = vmatprep.subr.mxu0 0.0
    %210 = vmatpush1.xpose.msra.mxu0 0.0
    %211 = vmatprep.subr.mxu0 0.0
    %212 = vmatpush1.xpose.msra.mxu0 0.0
    %213 = vmatprep.subr.mxu0 0.0
    %214 = vmatpush1.xpose.msra.mxu0 0.0
    %215 = vmatprep.subr.mxu0 0.0
    %216 = vmatpush1.xpose.msra.mxu0 0.0
    %217 = vmatprep.subr.mxu0 0.0
    %218 = vmatpush1.xpose.msra.mxu0 0.0
    %219 = vmatprep.subr.mxu0 0.0
    %220 = vmatpush1.xpose.msra.mxu0 0.0
    %221 = vmatprep.subr.mxu0 0.0
    %222 = vmatpush1.xpose.msra.mxu0 0.0
    %223 = vmatprep.subr.mxu0 0.0
    %224 = vmatpush1.xpose.msra.mxu0 0.0
    %225 = vmatprep.subr.mxu0 0.0
    %226 = vmatpush1.xpose.msra.mxu0 0.0
    %227 = vmatprep.subr.mxu0 0.0
    %228 = vmatpush1.xpose.msra.mxu0 0.0
    %229 = vmatprep.subr.mxu0 0.0
    %230 = vmatpush1.xpose.msra.mxu0 0.0
    %231 = vmatprep.subr.mxu0 0.0
    %232 = vmatpush1.xpose.msra.mxu0 0.0
    %233 = vmatprep.subr.mxu0 0.0
    %234 = vmatpush1.xpose.msra.mxu0 0.0
    %235 = vmatprep.subr.mxu0 0.0
    %236 = vmatpush1.xpose.msra.mxu0 0.0
    %237 = vmatprep.subr.mxu0 0.0
    %238 = vmatpush1.xpose.msra.mxu0 0.0
    %239 = vmatprep.subr.mxu0 0.0
    %240 = vmatpush1.xpose.msra.mxu0 0.0
    %241 = vmatprep.subr.mxu0 0.0
    %242 = vmatpush1.xpose.msra.mxu0 0.0
    %243 = vmatprep.subr.mxu0 0.0
    %244 = vmatpush1.xpose.msra.mxu0 0.0
    %245 = vmatprep.mubr.f32.mxu0 0.0
    %246 = vmatmul.mubr.f32.gmra.mrb[0].mxu0 %v177
    %v247 = vpop.f32.mrb[0].mxu0
    %v248 = vadd.f32 0.0, %v247
    %v249 = vpop.f32.mrb[0].mxu0
    %250 = vdwg.mxu0
    %252 = vrot.lane.b32.xlu0 %v154, 96
    %v253 = vpop.permute.xlu0 %252
    %v254 = vsel %vm176, %v154, 0
    %v256 = vsel %vm176, %v253, 0
    %258 = vmatprep.subr.mxu0 0.0
    %259 = vmatpush1.xpose.msra.mxu0 %v256
    %260 = vmatprep.subr.mxu0 0.0
    %261 = vmatpush1.xpose.msra.mxu0 0.0
    %262 = vmatprep.subr.mxu0 0.0
    %263 = vmatpush1.xpose.msra.mxu0 0.0
    %264 = vmatprep.subr.mxu0 0.0
    %265 = vmatpush1.xpose.msra.mxu0 0.0
    %266 = vmatprep.subr.mxu0 0.0
    %267 = vmatpush1.xpose.msra.mxu0 0.0
    %268 = vmatprep.subr.mxu0 0.0
    %269 = vmatpush1.xpose.msra.mxu0 0.0
    %270 = vmatprep.subr.mxu0 0.0
    %271 = vmatpush1.xpose.msra.mxu0 0.0
    %272 = vmatprep.subr.mxu0 0.0
    %273 = vmatpush1.xpose.msra.mxu0 0.0
    %274 = vmatprep.subr.mxu0 0.0
    %275 = vmatpush1.xpose.msra.mxu0 0.0
    %276 = vmatprep.subr.mxu0 0.0
    %277 = vmatpush1.xpose.msra.mxu0 0.0
    %278 = vmatprep.subr.mxu0 0.0
    %279 = vmatpush1.xpose.msra.mxu0 0.0
    %280 = vmatprep.subr.mxu0 0.0
    %281 = vmatpush1.xpose.msra.mxu0 0.0
    %282 = vmatprep.subr.mxu0 0.0
    %283 = vmatpush1.xpose.msra.mxu0 0.0
    %284 = vmatprep.subr.mxu0 0.0
    %285 = vmatpush1.xpose.msra.mxu0 0.0
    %286 = vmatprep.subr.mxu0 0.0
    %287 = vmatpush1.xpose.msra.mxu0 0.0
    %288 = vmatprep.subr.mxu0 0.0
    %289 = vmatpush1.xpose.msra.mxu0 0.0
    %290 = vmatprep.subr.mxu0 0.0
    %291 = vmatpush1.xpose.msra.mxu0 0.0
    %292 = vmatprep.subr.mxu0 0.0
    %293 = vmatpush1.xpose.msra.mxu0 0.0
    %294 = vmatprep.subr.mxu0 0.0
    %295 = vmatpush1.xpose.msra.mxu0 0.0
    %296 = vmatprep.subr.mxu0 0.0
    %297 = vmatpush1.xpose.msra.mxu0 0.0
    %298 = vmatprep.subr.mxu0 0.0
    %299 = vmatpush1.xpose.msra.mxu0 0.0
    %300 = vmatprep.subr.mxu0 0.0
    %301 = vmatpush1.xpose.msra.mxu0 0.0
    %302 = vmatprep.subr.mxu0 0.0
    %303 = vmatpush1.xpose.msra.mxu0 0.0
    %304 = vmatprep.subr.mxu0 0.0
    %305 = vmatpush1.xpose.msra.mxu0 0.0
    %306 = vmatprep.subr.mxu0 0.0
    %307 = vmatpush1.xpose.msra.mxu0 0.0
    %308 = vmatprep.subr.mxu0 0.0
    %309 = vmatpush1.xpose.msra.mxu0 0.0
    %310 = vmatprep.subr.mxu0 0.0
    %311 = vmatpush1.xpose.msra.mxu0 0.0
    %312 = vmatprep.subr.mxu0 0.0
    %313 = vmatpush1.xpose.msra.mxu0 0.0
    %314 = vmatprep.subr.mxu0 0.0
    %315 = vmatpush1.xpose.msra.mxu0 0.0
    %316 = vmatprep.subr.mxu0 0.0
    %317 = vmatpush1.xpose.msra.mxu0 0.0
    %318 = vmatprep.subr.mxu0 0.0
    %319 = vmatpush1.xpose.msra.mxu0 0.0
    %320 = vmatprep.subr.mxu0 0.0
    %321 = vmatpush1.xpose.msra.mxu0 0.0
    %322 = vmatprep.mubr.f32.mxu0 0.0
    %323 = vmatmul.mubr.f32.gmra.mrb[0].mxu0 %v254
    %v324 = vpop.f32.mrb[0].mxu0
    %v325 = vadd.f32 0.0, %v324
    %v326 = vpop.f32.mrb[0].mxu0
    %327 = vdwg.mxu0
    %v328 = vsel %vm161, 1, 0
    %vm329 = vcmp.eq.s32.totalorder %v328, 1
    %v330 = vsel %vm329, %v248, -3.4028235e+38
    %v331 = vsel %vm329, %v325, -3.4028235e+38
    %v332 = vsel %vm176, %v330, -inf
    %333 = vmax.xlane.f32.xlu0 %v332
    %v334 = vpop.xlane.xlu0 %333
    %v335 = vsel %vm176, %v331, -inf
    %336 = vmax.xlane.f32.xlu0 %v335
    %v337 = vpop.xlane.xlu0 %336
    %v338 = vsub.f32 %v330, %v334
    %v339 = vsub.f32 %v331, %v337
    %v340 = vmul.f32 %v338, 1.442695
    %v341 = vpow.pop %v340
    %v342 = vmul.f32 %v339, 1.442695
    %v343 = vpow.pop %v342
    %v344 = vsel %vm176, %v341, 0.0
    %345 = vadd.xlane.f32.xlu0 %v344
    %v346 = vpop.xlane.xlu0 %345
    %v347 = vsel %vm176, %v343, 0.0
    %348 = vadd.xlane.f32.xlu0 %v347
    %v349 = vpop.xlane.xlu0 %348
    %v350 = vrcp.pop %v346
    %v351 = vrcp.pop %v349
    %v352 = vmul.f32 %v341, %v350
    %v353 = vmul.f32 %v343, %v351
    %354 = vrot.lane.b32.xlu0 %v149, 64
    %v355 = vpop.permute.xlu0 %354
    %v358 = vsel %vm176, %v352, 0
    %360 = vmatprep.subr.mxu0 0.0
    %361 = vmatpush1.msra.mxu0 %v355
    %362 = vmatprep.subr.mxu0 0.0
    %363 = vmatpush1.msra.mxu0 0.0
    %364 = vmatprep.subr.mxu0 0.0
    %365 = vmatpush1.msra.mxu0 0.0
    %366 = vmatprep.subr.mxu0 0.0
    %367 = vmatpush1.msra.mxu0 0.0
    %368 = vmatprep.subr.mxu0 0.0
    %369 = vmatpush1.msra.mxu0 0.0
    %370 = vmatprep.subr.mxu0 0.0
    %371 = vmatpush1.msra.mxu0 0.0
    %372 = vmatprep.subr.mxu0 0.0
    %373 = vmatpush1.msra.mxu0 0.0
    %374 = vmatprep.subr.mxu0 0.0
    %375 = vmatpush1.msra.mxu0 0.0
    %376 = vmatprep.subr.mxu0 0.0
    %377 = vmatpush1.msra.mxu0 0.0
    %378 = vmatprep.subr.mxu0 0.0
    %379 = vmatpush1.msra.mxu0 0.0
    %380 = vmatprep.subr.mxu0 0.0
    %381 = vmatpush1.msra.mxu0 0.0
    %382 = vmatprep.subr.mxu0 0.0
    %383 = vmatpush1.msra.mxu0 0.0
    %384 = vmatprep.subr.mxu0 0.0
    %385 = vmatpush1.msra.mxu0 0.0
    %386 = vmatprep.subr.mxu0 0.0
    %387 = vmatpush1.msra.mxu0 0.0
    %388 = vmatprep.subr.mxu0 0.0
    %389 = vmatpush1.msra.mxu0 0.0
    %390 = vmatprep.subr.mxu0 0.0
    %391 = vmatpush1.msra.mxu0 0.0
    %392 = vmatprep.subr.mxu0 0.0
    %393 = vmatpush1.msra.mxu0 0.0
    %394 = vmatprep.subr.mxu0 0.0
    %395 = vmatpush1.msra.mxu0 0.0
    %396 = vmatprep.subr.mxu0 0.0
    %397 = vmatpush1.msra.mxu0 0.0
    %398 = vmatprep.subr.mxu0 0.0
    %399 = vmatpush1.msra.mxu0 0.0
    %400 = vmatprep.subr.mxu0 0.0
    %401 = vmatpush1.msra.mxu0 0.0
    %402 = vmatprep.subr.mxu0 0.0
    %403 = vmatpush1.msra.mxu0 0.0
    %404 = vmatprep.subr.mxu0 0.0
    %405 = vmatpush1.msra.mxu0 0.0
    %406 = vmatprep.subr.mxu0 0.0
    %407 = vmatpush1.msra.mxu0 0.0
    %408 = vmatprep.subr.mxu0 0.0
    %409 = vmatpush1.msra.mxu0 0.0
    %410 = vmatprep.subr.mxu0 0.0
    %411 = vmatpush1.msra.mxu0 0.0
    %412 = vmatprep.subr.mxu0 0.0
    %413 = vmatpush1.msra.mxu0 0.0
    %414 = vmatprep.subr.mxu0 0.0
    %415 = vmatpush1.msra.mxu0 0.0
    %416 = vmatprep.subr.mxu0 0.0
    %417 = vmatpush1.msra.mxu0 0.0
    %418 = vmatprep.subr.mxu0 0.0
    %419 = vmatpush1.msra.mxu0 0.0
    %420 = vmatprep.subr.mxu0 0.0
    %421 = vmatpush1.msra.mxu0 0.0
    %422 = vmatprep.subr.mxu0 0.0
    %423 = vmatpush1.msra.mxu0 0.0
    %424 = vmatprep.mubr.f32.mxu0 0.0
    %425 = vmatmul.mubr.f32.gmra.mrb[0].mxu0 %v358
    %v426 = vpop.f32.mrb[0].mxu0
    %v427 = vadd.f32 0.0, %v426
    %v428 = vpop.f32.mrb[0].mxu0
    %429 = vdwg.mxu0
    %430 = vrot.lane.b32.xlu0 %v154, 64
    %v431 = vpop.permute.xlu0 %430
    %v434 = vsel %vm176, %v353, 0
    %436 = vmatprep.subr.mxu0 0.0
    %437 = vmatpush1.msra.mxu0 %v431
    %438 = vmatprep.subr.mxu0 0.0
    %439 = vmatpush1.msra.mxu0 0.0
    %440 = vmatprep.subr.mxu0 0.0
    %441 = vmatpush1.msra.mxu0 0.0
    %442 = vmatprep.subr.mxu0 0.0
    %443 = vmatpush1.msra.mxu0 0.0
    %444 = vmatprep.subr.mxu0 0.0
    %445 = vmatpush1.msra.mxu0 0.0
    %446 = vmatprep.subr.mxu0 0.0
    %447 = vmatpush1.msra.mxu0 0.0
    %448 = vmatprep.subr.mxu0 0.0
    %449 = vmatpush1.msra.mxu0 0.0
    %450 = vmatprep.subr.mxu0 0.0
    %451 = vmatpush1.msra.mxu0 0.0
    %452 = vmatprep.subr.mxu0 0.0
    %453 = vmatpush1.msra.mxu0 0.0
    %454 = vmatprep.subr.mxu0 0.0
    %455 = vmatpush1.msra.mxu0 0.0
    %456 = vmatprep.subr.mxu0 0.0
    %457 = vmatpush1.msra.mxu0 0.0
    %458 = vmatprep.subr.mxu0 0.0
    %459 = vmatpush1.msra.mxu0 0.0
    %460 = vmatprep.subr.mxu0 0.0
    %461 = vmatpush1.msra.mxu0 0.0
    %462 = vmatprep.subr.mxu0 0.0
    %463 = vmatpush1.msra.mxu0 0.0
    %464 = vmatprep.subr.mxu0 0.0
    %465 = vmatpush1.msra.mxu0 0.0
    %466 = vmatprep.subr.mxu0 0.0
    %467 = vmatpush1.msra.mxu0 0.0
    %468 = vmatprep.subr.mxu0 0.0
    %469 = vmatpush1.msra.mxu0 0.0
    %470 = vmatprep.subr.mxu0 0.0
    %471 = vmatpush1.msra.mxu0 0.0
    %472 = vmatprep.subr.mxu0 0.0
    %473 = vmatpush1.msra.mxu0 0.0
    %474 = vmatprep.subr.mxu0 0.0
    %475 = vmatpush1.msra.mxu0 0.0
    %476 = vmatprep.subr.mxu0 0.0
    %477 = vmatpush1.msra.mxu0 0.0
    %478 = vmatprep.subr.mxu0 0.0
    %479 = vmatpush1.msra.mxu0 0.0
    %480 = vmatprep.subr.mxu0 0.0
    %481 = vmatpush1.msra.mxu0 0.0
    %482 = vmatprep.subr.mxu0 0.0
    %483 = vmatpush1.msra.mxu0 0.0
    %484 = vmatprep.subr.mxu0 0.0
    %485 = vmatpush1.msra.mxu0 0.0
    %486 = vmatprep.subr.mxu0 0.0
    %487 = vmatpush1.msra.mxu0 0.0
    %488 = vmatprep.subr.mxu0 0.0
    %489 = vmatpush1.msra.mxu0 0.0
    %490 = vmatprep.subr.mxu0 0.0
    %491 = vmatpush1.msra.mxu0 0.0
    %492 = vmatprep.subr.mxu0 0.0
    %493 = vmatpush1.msra.mxu0 0.0
    %494 = vmatprep.subr.mxu0 0.0
    %495 = vmatpush1.msra.mxu0 0.0
    %496 = vmatprep.subr.mxu0 0.0
    %497 = vmatpush1.msra.mxu0 0.0
    %498 = vmatprep.subr.mxu0 0.0
    %499 = vmatpush1.msra.mxu0 0.0
    %500 = vmatprep.mubr.f32.mxu0 0.0
    %501 = vmatmul.mubr.f32.gmra.mrb[0].mxu0 %v434
    %v502 = vpop.f32.mrb[0].mxu0
    %v503 = vadd.f32 0.0, %v502
    %v504 = vpop.f32.mrb[0].mxu0
    %505 = vdwg.mxu0
    %v507 = vsel %vm176, %v427, 0
    %v510 = vsel %vm176, %v503, 0
    %512 = vmatprep.subr.mxu0 0.0
    %513 = vmatpush1.msra.mxu0 %v162
    %514 = vmatprep.subr.mxu0 0.0
    %515 = vmatpush1.msra.mxu0 0.0
    %516 = vmatprep.subr.mxu0 0.0
    %517 = vmatpush1.msra.mxu0 0.0
    %518 = vmatprep.subr.mxu0 0.0
    %519 = vmatpush1.msra.mxu0 0.0
    %520 = vmatprep.subr.mxu0 0.0
    %521 = vmatpush1.msra.mxu0 0.0
    %522 = vmatprep.subr.mxu0 0.0
    %523 = vmatpush1.msra.mxu0 0.0
    %524 = vmatprep.subr.mxu0 0.0
    %525 = vmatpush1.msra.mxu0 0.0
    %526 = vmatprep.subr.mxu0 0.0
    %527 = vmatpush1.msra.mxu0 0.0
    %528 = vmatprep.subr.mxu0 0.0
    %529 = vmatpush1.msra.mxu0 0.0
    %530 = vmatprep.subr.mxu0 0.0
    %531 = vmatpush1.msra.mxu0 0.0
    %532 = vmatprep.subr.mxu0 0.0
    %533 = vmatpush1.msra.mxu0 0.0
    %534 = vmatprep.subr.mxu0 0.0
    %535 = vmatpush1.msra.mxu0 0.0
    %536 = vmatprep.subr.mxu0 0.0
    %537 = vmatpush1.msra.mxu0 0.0
    %538 = vmatprep.subr.mxu0 0.0
    %539 = vmatpush1.msra.mxu0 0.0
    %540 = vmatprep.subr.mxu0 0.0
    %541 = vmatpush1.msra.mxu0 0.0
    %542 = vmatprep.subr.mxu0 0.0
    %543 = vmatpush1.msra.mxu0 0.0
    %544 = vmatprep.subr.mxu0 0.0
    %545 = vmatpush1.msra.mxu0 0.0
    %546 = vmatprep.subr.mxu0 0.0
    %547 = vmatpush1.msra.mxu0 0.0
    %548 = vmatprep.subr.mxu0 0.0
    %549 = vmatpush1.msra.mxu0 0.0
    %550 = vmatprep.subr.mxu0 0.0
    %551 = vmatpush1.msra.mxu0 0.0
    %552 = vmatprep.subr.mxu0 0.0
    %553 = vmatpush1.msra.mxu0 0.0
    %554 = vmatprep.subr.mxu0 0.0
    %555 = vmatpush1.msra.mxu0 0.0
    %556 = vmatprep.subr.mxu0 0.0
    %557 = vmatpush1.msra.mxu0 0.0
    %558 = vmatprep.subr.mxu0 0.0
    %559 = vmatpush1.msra.mxu0 0.0
    %560 = vmatprep.subr.mxu0 0.0
    %561 = vmatpush1.msra.mxu0 0.0
    %562 = vmatprep.subr.mxu0 0.0
    %563 = vmatpush1.msra.mxu0 0.0
    %564 = vmatprep.subr.mxu0 0.0
    %565 = vmatpush1.msra.mxu0 0.0
    %566 = vmatprep.subr.mxu0 0.0
    %567 = vmatpush1.msra.mxu0 0.0
    %568 = vmatprep.subr.mxu0 0.0
    %569 = vmatpush1.msra.mxu0 0.0
    %570 = vmatprep.subr.mxu0 0.0
    %571 = vmatpush1.msra.mxu0 0.0
    %572 = vmatprep.subr.mxu0 0.0
    %573 = vmatpush1.msra.mxu0 0.0
    %574 = vmatprep.subr.mxu0 0.0
    %575 = vmatpush1.msra.mxu0 0.0
    %576 = vmatprep.mubr.f32.mxu0 0.0
    %577 = vmatmul.mubr.f32.gmra.mrb[0].mxu0 %v507
    %v578 = vpop.f32.mrb[0].mxu0
    %v579 = vadd.f32 0.0, %v578
    %v580 = vpop.f32.mrb[0].mxu0
    %581 = vmatprep.mubr.f32.mxu0 0.0
    %582 = vmatmul.mubr.f32.gmra.mrb[0].mxu0 %v510
    %v583 = vpop.f32.mrb[0].mxu0
    %v584 = vadd.f32 0.0, %v583
    %v585 = vpop.f32.mrb[0].mxu0
    %586 = vdwg.mxu0
    %v587 = vadd.f32 %v171, %v579
    %v588 = vadd.f32 %v171, %v584
    %589 = vrot.lane.b32.xlu0 %v149, 120
    %v590 = vpop.permute.xlu0 %589
    %591 = vrot.lane.b32.xlu0 %v149, 88
    %v592 = vpop.permute.xlu0 %591
    %v593 = vsel %vm176, %v590, 0
    %v595 = vsel %vm176, %v592, 0
    %597 = vmatprep.subr.mxu0 0.0
    %598 = vmatpush1.xpose.msra.mxu0 %v595
    %599 = vmatprep.subr.mxu0 0.0
    %600 = vmatpush1.xpose.msra.mxu0 0.0
    %601 = vmatprep.subr.mxu0 0.0
    %602 = vmatpush1.xpose.msra.mxu0 0.0
    %603 = vmatprep.subr.mxu0 0.0
    %604 = vmatpush1.xpose.msra.mxu0 0.0
    %605 = vmatprep.subr.mxu0 0.0
    %606 = vmatpush1.xpose.msra.mxu0 0.0
    %607 = vmatprep.subr.mxu0 0.0
    %608 = vmatpush1.xpose.msra.mxu0 0.0
    %609 = vmatprep.subr.mxu0 0.0
    %610 = vmatpush1.xpose.msra.mxu0 0.0
    %611 = vmatprep.subr.mxu0 0.0
    %612 = vmatpush1.xpose.msra.mxu0 0.0
    %613 = vmatprep.subr.mxu0 0.0
    %614 = vmatpush1.xpose.msra.mxu0 0.0
    %615 = vmatprep.subr.mxu0 0.0
    %616 = vmatpush1.xpose.msra.mxu0 0.0
    %617 = vmatprep.subr.mxu0 0.0
    %618 = vmatpush1.xpose.msra.mxu0 0.0
    %619 = vmatprep.subr.mxu0 0.0
    %620 = vmatpush1.xpose.msra.mxu0 0.0
    %621 = vmatprep.subr.mxu0 0.0
    %622 = vmatpush1.xpose.msra.mxu0 0.0
    %623 = vmatprep.subr.mxu0 0.0
    %624 = vmatpush1.xpose.msra.mxu0 0.0
    %625 = vmatprep.subr.mxu0 0.0
    %626 = vmatpush1.xpose.msra.mxu0 0.0
    %627 = vmatprep.subr.mxu0 0.0
    %628 = vmatpush1.xpose.msra.mxu0 0.0
    %629 = vmatprep.subr.mxu0 0.0
    %630 = vmatpush1.xpose.msra.mxu0 0.0
    %631 = vmatprep.subr.mxu0 0.0
    %632 = vmatpush1.xpose.msra.mxu0 0.0
    %633 = vmatprep.subr.mxu0 0.0
    %634 = vmatpush1.xpose.msra.mxu0 0.0
    %635 = vmatprep.subr.mxu0 0.0
    %636 = vmatpush1.xpose.msra.mxu0 0.0
    %637 = vmatprep.subr.mxu0 0.0
    %638 = vmatpush1.xpose.msra.mxu0 0.0
    %639 = vmatprep.subr.mxu0 0.0
    %640 = vmatpush1.xpose.msra.mxu0 0.0
    %641 = vmatprep.subr.mxu0 0.0
    %642 = vmatpush1.xpose.msra.mxu0 0.0
    %643 = vmatprep.subr.mxu0 0.0
    %644 = vmatpush1.xpose.msra.mxu0 0.0
    %645 = vmatprep.subr.mxu0 0.0
    %646 = vmatpush1.xpose.msra.mxu0 0.0
    %647 = vmatprep.subr.mxu0 0.0
    %648 = vmatpush1.xpose.msra.mxu0 0.0
    %649 = vmatprep.subr.mxu0 0.0
    %650 = vmatpush1.xpose.msra.mxu0 0.0
    %651 = vmatprep.subr.mxu0 0.0
    %652 = vmatpush1.xpose.msra.mxu0 0.0
    %653 = vmatprep.subr.mxu0 0.0
    %654 = vmatpush1.xpose.msra.mxu0 0.0
    %655 = vmatprep.subr.mxu0 0.0
    %656 = vmatpush1.xpose.msra.mxu0 0.0
    %657 = vmatprep.subr.mxu0 0.0
    %658 = vmatpush1.xpose.msra.mxu0 0.0
    %659 = vmatprep.subr.mxu0 0.0
    %660 = vmatpush1.xpose.msra.mxu0 0.0
    %661 = vmatprep.mubr.f32.mxu0 0.0
    %662 = vmatmul.mubr.f32.gmra.mrb[0].mxu0 %v593
    %v663 = vpop.f32.mrb[0].mxu0
    %v664 = vadd.f32 0.0, %v663
    %v665 = vpop.f32.mrb[0].mxu0
    %666 = vdwg.mxu0
    %667 = vrot.lane.b32.xlu0 %v154, 120
    %v668 = vpop.permute.xlu0 %667
    %669 = vrot.lane.b32.xlu0 %v154, 88
    %v670 = vpop.permute.xlu0 %669
    %v671 = vsel %vm176, %v668, 0
    %v673 = vsel %vm176, %v670, 0
    %675 = vmatprep.subr.mxu0 0.0
    %676 = vmatpush1.xpose.msra.mxu0 %v673
    %677 = vmatprep.subr.mxu0 0.0
    %678 = vmatpush1.xpose.msra.mxu0 0.0
    %679 = vmatprep.subr.mxu0 0.0
    %680 = vmatpush1.xpose.msra.mxu0 0.0
    %681 = vmatprep.subr.mxu0 0.0
    %682 = vmatpush1.xpose.msra.mxu0 0.0
    %683 = vmatprep.subr.mxu0 0.0
    %684 = vmatpush1.xpose.msra.mxu0 0.0
    %685 = vmatprep.subr.mxu0 0.0
    %686 = vmatpush1.xpose.msra.mxu0 0.0
    %687 = vmatprep.subr.mxu0 0.0
    %688 = vmatpush1.xpose.msra.mxu0 0.0
    %689 = vmatprep.subr.mxu0 0.0
    %690 = vmatpush1.xpose.msra.mxu0 0.0
    %691 = vmatprep.subr.mxu0 0.0
    %692 = vmatpush1.xpose.msra.mxu0 0.0
    %693 = vmatprep.subr.mxu0 0.0
    %694 = vmatpush1.xpose.msra.mxu0 0.0
    %695 = vmatprep.subr.mxu0 0.0
    %696 = vmatpush1.xpose.msra.mxu0 0.0
    %697 = vmatprep.subr.mxu0 0.0
    %698 = vmatpush1.xpose.msra.mxu0 0.0
    %699 = vmatprep.subr.mxu0 0.0
    %700 = vmatpush1.xpose.msra.mxu0 0.0
    %701 = vmatprep.subr.mxu0 0.0
    %702 = vmatpush1.xpose.msra.mxu0 0.0
    %703 = vmatprep.subr.mxu0 0.0
    %704 = vmatpush1.xpose.msra.mxu0 0.0
    %705 = vmatprep.subr.mxu0 0.0
    %706 = vmatpush1.xpose.msra.mxu0 0.0
    %707 = vmatprep.subr.mxu0 0.0
    %708 = vmatpush1.xpose.msra.mxu0 0.0
    %709 = vmatprep.subr.mxu0 0.0
    %710 = vmatpush1.xpose.msra.mxu0 0.0
    %711 = vmatprep.subr.mxu0 0.0
    %712 = vmatpush1.xpose.msra.mxu0 0.0
    %713 = vmatprep.subr.mxu0 0.0
    %714 = vmatpush1.xpose.msra.mxu0 0.0
    %715 = vmatprep.subr.mxu0 0.0
    %716 = vmatpush1.xpose.msra.mxu0 0.0
    %717 = vmatprep.subr.mxu0 0.0
    %718 = vmatpush1.xpose.msra.mxu0 0.0
    %719 = vmatprep.subr.mxu0 0.0
    %720 = vmatpush1.xpose.msra.mxu0 0.0
    %721 = vmatprep.subr.mxu0 0.0
    %722 = vmatpush1.xpose.msra.mxu0 0.0
    %723 = vmatprep.subr.mxu0 0.0
    %724 = vmatpush1.xpose.msra.mxu0 0.0
    %725 = vmatprep.subr.mxu0 0.0
    %726 = vmatpush1.xpose.msra.mxu0 0.0
    %727 = vmatprep.subr.mxu0 0.0
    %728 = vmatpush1.xpose.msra.mxu0 0.0
    %729 = vmatprep.subr.mxu0 0.0
    %730 = vmatpush1.xpose.msra.mxu0 0.0
    %731 = vmatprep.subr.mxu0 0.0
    %732 = vmatpush1.xpose.msra.mxu0 0.0
    %733 = vmatprep.subr.mxu0 0.0
    %734 = vmatpush1.xpose.msra.mxu0 0.0
    %735 = vmatprep.subr.mxu0 0.0
    %736 = vmatpush1.xpose.msra.mxu0 0.0
    %737 = vmatprep.subr.mxu0 0.0
    %738 = vmatpush1.xpose.msra.mxu0 0.0
    %739 = vmatprep.mubr.f32.mxu0 0.0
    %740 = vmatmul.mubr.f32.gmra.mrb[0].mxu0 %v671
    %v741 = vpop.f32.mrb[0].mxu0
    %v742 = vadd.f32 0.0, %v741
    %v743 = vpop.f32.mrb[0].mxu0
    %744 = vdwg.mxu0
    %v745 = vsel %vm329, %v664, -3.4028235e+38
    %v746 = vsel %vm329, %v742, -3.4028235e+38
    %v747 = vsel %vm176, %v745, -inf
    %748 = vmax.xlane.f32.xlu0 %v747
    %v749 = vpop.xlane.xlu0 %748
    %v750 = vsel %vm176, %v746, -inf
    %751 = vmax.xlane.f32.xlu0 %v750
    %v752 = vpop.xlane.xlu0 %751
    %v753 = vsub.f32 %v745, %v749
    %v754 = vsub.f32 %v746, %v752
    %v755 = vmul.f32 %v753, 1.442695
    %v756 = vpow.pop %v755
    %v757 = vmul.f32 %v754, 1.442695
    %v758 = vpow.pop %v757
    %v759 = vsel %vm176, %v756, 0.0
    %760 = vadd.xlane.f32.xlu0 %v759
    %v761 = vpop.xlane.xlu0 %760
    %v762 = vsel %vm176, %v758, 0.0
    %763 = vadd.xlane.f32.xlu0 %v762
    %v764 = vpop.xlane.xlu0 %763
    %v765 = vrcp.pop %v761
    %v766 = vrcp.pop %v764
    %v767 = vmul.f32 %v756, %v765
    %v768 = vmul.f32 %v758, %v766
    %769 = vrot.lane.b32.xlu0 %v149, 56
    %v770 = vpop.permute.xlu0 %769
    %v773 = vsel %vm176, %v767, 0
    %775 = vmatprep.subr.mxu0 0.0
    %776 = vmatpush1.msra.mxu0 %v770
    %777 = vmatprep.subr.mxu0 0.0
    %778 = vmatpush1.msra.mxu0 0.0
    %779 = vmatprep.subr.mxu0 0.0
    %780 = vmatpush1.msra.mxu0 0.0
    %781 = vmatprep.subr.mxu0 0.0
    %782 = vmatpush1.msra.mxu0 0.0
    %783 = vmatprep.subr.mxu0 0.0
    %784 = vmatpush1.msra.mxu0 0.0
    %785 = vmatprep.subr.mxu0 0.0
    %786 = vmatpush1.msra.mxu0 0.0
    %787 = vmatprep.subr.mxu0 0.0
    %788 = vmatpush1.msra.mxu0 0.0
    %789 = vmatprep.subr.mxu0 0.0
    %790 = vmatpush1.msra.mxu0 0.0
    %791 = vmatprep.subr.mxu0 0.0
    %792 = vmatpush1.msra.mxu0 0.0
    %793 = vmatprep.subr.mxu0 0.0
    %794 = vmatpush1.msra.mxu0 0.0
    %795 = vmatprep.subr.mxu0 0.0
    %796 = vmatpush1.msra.mxu0 0.0
    %797 = vmatprep.subr.mxu0 0.0
    %798 = vmatpush1.msra.mxu0 0.0
    %799 = vmatprep.subr.mxu0 0.0
    %800 = vmatpush1.msra.mxu0 0.0
    %801 = vmatprep.subr.mxu0 0.0
    %802 = vmatpush1.msra.mxu0 0.0
    %803 = vmatprep.subr.mxu0 0.0
    %804 = vmatpush1.msra.mxu0 0.0
    %805 = vmatprep.subr.mxu0 0.0
    %806 = vmatpush1.msra.mxu0 0.0
    %807 = vmatprep.subr.mxu0 0.0
    %808 = vmatpush1.msra.mxu0 0.0
    %809 = vmatprep.subr.mxu0 0.0
    %810 = vmatpush1.msra.mxu0 0.0
    %811 = vmatprep.subr.mxu0 0.0
    %812 = vmatpush1.msra.mxu0 0.0
    %813 = vmatprep.subr.mxu0 0.0
    %814 = vmatpush1.msra.mxu0 0.0
    %815 = vmatprep.subr.mxu0 0.0
    %816 = vmatpush1.msra.mxu0 0.0
    %817 = vmatprep.subr.mxu0 0.0
    %818 = vmatpush1.msra.mxu0 0.0
    %819 = vmatprep.subr.mxu0 0.0
    %820 = vmatpush1.msra.mxu0 0.0
    %821 = vmatprep.subr.mxu0 0.0
    %822 = vmatpush1.msra.mxu0 0.0
    %823 = vmatprep.subr.mxu0 0.0
    %824 = vmatpush1.msra.mxu0 0.0
    %825 = vmatprep.subr.mxu0 0.0
    %826 = vmatpush1.msra.mxu0 0.0
    %827 = vmatprep.subr.mxu0 0.0
    %828 = vmatpush1.msra.mxu0 0.0
    %829 = vmatprep.subr.mxu0 0.0
    %830 = vmatpush1.msra.mxu0 0.0
    %831 = vmatprep.subr.mxu0 0.0
    %832 = vmatpush1.msra.mxu0 0.0
    %833 = vmatprep.subr.mxu0 0.0
    %834 = vmatpush1.msra.mxu0 0.0
    %835 = vmatprep.subr.mxu0 0.0
    %836 = vmatpush1.msra.mxu0 0.0
    %837 = vmatprep.subr.mxu0 0.0
    %838 = vmatpush1.msra.mxu0 0.0
    %839 = vmatprep.mubr.f32.mxu0 0.0
    %840 = vmatmul.mubr.f32.gmra.mrb[0].mxu0 %v773
    %v841 = vpop.f32.mrb[0].mxu0
    %v842 = vadd.f32 0.0, %v841
    %v843 = vpop.f32.mrb[0].mxu0
    %844 = vdwg.mxu0
    %845 = vrot.lane.b32.xlu0 %v154, 56
    %v846 = vpop.permute.xlu0 %845
    %v849 = vsel %vm176, %v768, 0
    %851 = vmatprep.subr.mxu0 0.0
    %852 = vmatpush1.msra.mxu0 %v846
    %853 = vmatprep.subr.mxu0 0.0
    %854 = vmatpush1.msra.mxu0 0.0
    %855 = vmatprep.subr.mxu0 0.0
    %856 = vmatpush1.msra.mxu0 0.0
    %857 = vmatprep.subr.mxu0 0.0
    %858 = vmatpush1.msra.mxu0 0.0
    %859 = vmatprep.subr.mxu0 0.0
    %860 = vmatpush1.msra.mxu0 0.0
    %861 = vmatprep.subr.mxu0 0.0
    %862 = vmatpush1.msra.mxu0 0.0
    %863 = vmatprep.subr.mxu0 0.0
    %864 = vmatpush1.msra.mxu0 0.0
    %865 = vmatprep.subr.mxu0 0.0
    %866 = vmatpush1.msra.mxu0 0.0
    %867 = vmatprep.subr.mxu0 0.0
    %868 = vmatpush1.msra.mxu0 0.0
    %869 = vmatprep.subr.mxu0 0.0
    %870 = vmatpush1.msra.mxu0 0.0
    %871 = vmatprep.subr.mxu0 0.0
    %872 = vmatpush1.msra.mxu0 0.0
    %873 = vmatprep.subr.mxu0 0.0
    %874 = vmatpush1.msra.mxu0 0.0
    %875 = vmatprep.subr.mxu0 0.0
    %876 = vmatpush1.msra.mxu0 0.0
    %877 = vmatprep.subr.mxu0 0.0
    %878 = vmatpush1.msra.mxu0 0.0
    %879 = vmatprep.subr.mxu0 0.0
    %880 = vmatpush1.msra.mxu0 0.0
    %881 = vmatprep.subr.mxu0 0.0
    %882 = vmatpush1.msra.mxu0 0.0
    %883 = vmatprep.subr.mxu0 0.0
    %884 = vmatpush1.msra.mxu0 0.0
    %885 = vmatprep.subr.mxu0 0.0
    %886 = vmatpush1.msra.mxu0 0.0
    %887 = vmatprep.subr.mxu0 0.0
    %888 = vmatpush1.msra.mxu0 0.0
    %889 = vmatprep.subr.mxu0 0.0
    %890 = vmatpush1.msra.mxu0 0.0
    %891 = vmatprep.subr.mxu0 0.0
    %892 = vmatpush1.msra.mxu0 0.0
    %893 = vmatprep.subr.mxu0 0.0
    %894 = vmatpush1.msra.mxu0 0.0
    %895 = vmatprep.subr.mxu0 0.0
    %896 = vmatpush1.msra.mxu0 0.0
    %897 = vmatprep.subr.mxu0 0.0
    %898 = vmatpush1.msra.mxu0 0.0
    %899 = vmatprep.subr.mxu0 0.0
    %900 = vmatpush1.msra.mxu0 0.0
    %901 = vmatprep.subr.mxu0 0.0
    %902 = vmatpush1.msra.mxu0 0.0
    %903 = vmatprep.subr.mxu0 0.0
    %904 = vmatpush1.msra.mxu0 0.0
    %905 = vmatprep.subr.mxu0 0.0
    %906 = vmatpush1.msra.mxu0 0.0
    %907 = vmatprep.subr.mxu0 0.0
    %908 = vmatpush1.msra.mxu0 0.0
    %909 = vmatprep.subr.mxu0 0.0
    %910 = vmatpush1.msra.mxu0 0.0
    %911 = vmatprep.subr.mxu0 0.0
    %912 = vmatpush1.msra.mxu0 0.0
    %913 = vmatprep.subr.mxu0 0.0
    %914 = vmatpush1.msra.mxu0 0.0
    %915 = vmatprep.mubr.f32.mxu0 0.0
    %916 = vmatmul.mubr.f32.gmra.mrb[0].mxu0 %v849
    %v917 = vpop.f32.mrb[0].mxu0
    %v918 = vadd.f32 0.0, %v917
    %v919 = vpop.f32.mrb[0].mxu0
    %920 = vdwg.mxu0
    %v922 = vsel %vm176, %v842, 0
    %v925 = vsel %vm176, %v918, 0
    %927 = vmatprep.subr.mxu0 0.0
    %928 = vmatpush1.msra.mxu0 %v163
    %929 = vmatprep.subr.mxu0 0.0
    %930 = vmatpush1.msra.mxu0 0.0
    %931 = vmatprep.subr.mxu0 0.0
    %932 = vmatpush1.msra.mxu0 0.0
    %933 = vmatprep.subr.mxu0 0.0
    %934 = vmatpush1.msra.mxu0 0.0
    %935 = vmatprep.subr.mxu0 0.0
    %936 = vmatpush1.msra.mxu0 0.0
    %937 = vmatprep.subr.mxu0 0.0
    %938 = vmatpush1.msra.mxu0 0.0
    %939 = vmatprep.subr.mxu0 0.0
    %940 = vmatpush1.msra.mxu0 0.0
    %941 = vmatprep.subr.mxu0 0.0
    %942 = vmatpush1.msra.mxu0 0.0
    %943 = vmatprep.subr.mxu0 0.0
    %944 = vmatpush1.msra.mxu0 0.0
    %945 = vmatprep.subr.mxu0 0.0
    %946 = vmatpush1.msra.mxu0 0.0
    %947 = vmatprep.subr.mxu0 0.0
    %948 = vmatpush1.msra.mxu0 0.0
    %949 = vmatprep.subr.mxu0 0.0
    %950 = vmatpush1.msra.mxu0 0.0
    %951 = vmatprep.subr.mxu0 0.0
    %952 = vmatpush1.msra.mxu0 0.0
    %953 = vmatprep.subr.mxu0 0.0
    %954 = vmatpush1.msra.mxu0 0.0
    %955 = vmatprep.subr.mxu0 0.0
    %956 = vmatpush1.msra.mxu0 0.0
    %957 = vmatprep.subr.mxu0 0.0
    %958 = vmatpush1.msra.mxu0 0.0
    %959 = vmatprep.subr.mxu0 0.0
    %960 = vmatpush1.msra.mxu0 0.0
    %961 = vmatprep.subr.mxu0 0.0
    %962 = vmatpush1.msra.mxu0 0.0
    %963 = vmatprep.subr.mxu0 0.0
    %964 = vmatpush1.msra.mxu0 0.0
    %965 = vmatprep.subr.mxu0 0.0
    %966 = vmatpush1.msra.mxu0 0.0
    %967 = vmatprep.subr.mxu0 0.0
    %968 = vmatpush1.msra.mxu0 0.0
    %969 = vmatprep.subr.mxu0 0.0
    %970 = vmatpush1.msra.mxu0 0.0
    %971 = vmatprep.subr.mxu0 0.0
    %972 = vmatpush1.msra.mxu0 0.0
    %973 = vmatprep.subr.mxu0 0.0
    %974 = vmatpush1.msra.mxu0 0.0
    %975 = vmatprep.subr.mxu0 0.0
    %976 = vmatpush1.msra.mxu0 0.0
    %977 = vmatprep.subr.mxu0 0.0
    %978 = vmatpush1.msra.mxu0 0.0
    %979 = vmatprep.subr.mxu0 0.0
    %980 = vmatpush1.msra.mxu0 0.0
    %981 = vmatprep.subr.mxu0 0.0
    %982 = vmatpush1.msra.mxu0 0.0
    %983 = vmatprep.subr.mxu0 0.0
    %984 = vmatpush1.msra.mxu0 0.0
    %985 = vmatprep.subr.mxu0 0.0
    %986 = vmatpush1.msra.mxu0 0.0
    %987 = vmatprep.subr.mxu0 0.0
    %988 = vmatpush1.msra.mxu0 0.0
    %989 = vmatprep.subr.mxu0 0.0
    %990 = vmatpush1.msra.mxu0 0.0
    %991 = vmatprep.mubr.f32.mxu0 0.0
    %992 = vmatmul.mubr.f32.gmra.mrb[0].mxu0 %v922
    %v993 = vpop.f32.mrb[0].mxu0
    %v994 = vadd.f32 0.0, %v993
    %v995 = vpop.f32.mrb[0].mxu0
    %996 = vmatprep.mubr.f32.mxu0 0.0
    %997 = vmatmul.mubr.f32.gmra.mrb[0].mxu0 %v925
    %v998 = vpop.f32.mrb[0].mxu0
    %v999 = vadd.f32 0.0, %v998
    %v1000 = vpop.f32.mrb[0].mxu0
    %1001 = vdwg.mxu0
    %v1002 = vadd.f32 %v587, %v994
    %v1003 = vadd.f32 %v588, %v999
    %1004 = vrot.lane.b32.xlu0 %v149, 112
    %v1005 = vpop.permute.xlu0 %1004
    %1006 = vrot.lane.b32.xlu0 %v149, 80
    %v1007 = vpop.permute.xlu0 %1006
    %v1008 = vsel %vm176, %v1005, 0
    %v1010 = vsel %vm176, %v1007, 0
    %1012 = vmatprep.subr.mxu0 0.0
    %1013 = vmatpush1.xpose.msra.mxu0 %v1010
    %1014 = vmatprep.subr.mxu0 0.0
    %1015 = vmatpush1.xpose.msra.mxu0 0.0
    %1016 = vmatprep.subr.mxu0 0.0
    %1017 = vmatpush1.xpose.msra.mxu0 0.0
    %1018 = vmatprep.subr.mxu0 0.0
    %1019 = vmatpush1.xpose.msra.mxu0 0.0
    %1020 = vmatprep.subr.mxu0 0.0
    %1021 = vmatpush1.xpose.msra.mxu0 0.0
    %1022 = vmatprep.subr.mxu0 0.0
    %1023 = vmatpush1.xpose.msra.mxu0 0.0
    %1024 = vmatprep.subr.mxu0 0.0
    %1025 = vmatpush1.xpose.msra.mxu0 0.0
    %1026 = vmatprep.subr.mxu0 0.0
    %1027 = vmatpush1.xpose.msra.mxu0 0.0
    %1028 = vmatprep.subr.mxu0 0.0
    %1029 = vmatpush1.xpose.msra.mxu0 0.0
    %1030 = vmatprep.subr.mxu0 0.0
    %1031 = vmatpush1.xpose.msra.mxu0 0.0
    %1032 = vmatprep.subr.mxu0 0.0
    %1033 = vmatpush1.xpose.msra.mxu0 0.0
    %1034 = vmatprep.subr.mxu0 0.0
    %1035 = vmatpush1.xpose.msra.mxu0 0.0
    %1036 = vmatprep.subr.mxu0 0.0
    %1037 = vmatpush1.xpose.msra.mxu0 0.0
    %1038 = vmatprep.subr.mxu0 0.0
    %1039 = vmatpush1.xpose.msra.mxu0 0.0
    %1040 = vmatprep.subr.mxu0 0.0
    %1041 = vmatpush1.xpose.msra.mxu0 0.0
    %1042 = vmatprep.subr.mxu0 0.0
    %1043 = vmatpush1.xpose.msra.mxu0 0.0
    %1044 = vmatprep.subr.mxu0 0.0
    %1045 = vmatpush1.xpose.msra.mxu0 0.0
    %1046 = vmatprep.subr.mxu0 0.0
    %1047 = vmatpush1.xpose.msra.mxu0 0.0
    %1048 = vmatprep.subr.mxu0 0.0
    %1049 = vmatpush1.xpose.msra.mxu0 0.0
    %1050 = vmatprep.subr.mxu0 0.0
    %1051 = vmatpush1.xpose.msra.mxu0 0.0
    %1052 = vmatprep.subr.mxu0 0.0
    %1053 = vmatpush1.xpose.msra.mxu0 0.0
    %1054 = vmatprep.subr.mxu0 0.0
    %1055 = vmatpush1.xpose.msra.mxu0 0.0
    %1056 = vmatprep.subr.mxu0 0.0
    %1057 = vmatpush1.xpose.msra.mxu0 0.0
    %1058 = vmatprep.subr.mxu0 0.0
    %1059 = vmatpush1.xpose.msra.mxu0 0.0
    %1060 = vmatprep.subr.mxu0 0.0
    %1061 = vmatpush1.xpose.msra.mxu0 0.0
    %1062 = vmatprep.subr.mxu0 0.0
    %1063 = vmatpush1.xpose.msra.mxu0 0.0
    %1064 = vmatprep.subr.mxu0 0.0
    %1065 = vmatpush1.xpose.msra.mxu0 0.0
    %1066 = vmatprep.subr.mxu0 0.0
    %1067 = vmatpush1.xpose.msra.mxu0 0.0
    %1068 = vmatprep.subr.mxu0 0.0
    %1069 = vmatpush1.xpose.msra.mxu0 0.0
    %1070 = vmatprep.subr.mxu0 0.0
    %1071 = vmatpush1.xpose.msra.mxu0 0.0
    %1072 = vmatprep.subr.mxu0 0.0
    %1073 = vmatpush1.xpose.msra.mxu0 0.0
    %1074 = vmatprep.subr.mxu0 0.0
    %1075 = vmatpush1.xpose.msra.mxu0 0.0
    %1076 = vmatprep.mubr.f32.mxu0 0.0
    %1077 = vmatmul.mubr.f32.gmra.mrb[0].mxu0 %v1008
    %v1078 = vpop.f32.mrb[0].mxu0
    %v1079 = vadd.f32 0.0, %v1078
    %v1080 = vpop.f32.mrb[0].mxu0
    %1081 = vdwg.mxu0
    %1082 = vrot.lane.b32.xlu0 %v154, 112
    %v1083 = vpop.permute.xlu0 %1082
    %1084 = vrot.lane.b32.xlu0 %v154, 80
    %v1085 = vpop.permute.xlu0 %1084
    %v1086 = vsel %vm176, %v1083, 0
    %v1088 = vsel %vm176, %v1085, 0
    %1090 = vmatprep.subr.mxu0 0.0
    %1091 = vmatpush1.xpose.msra.mxu0 %v1088
    %1092 = vmatprep.subr.mxu0 0.0
    %1093 = vmatpush1.xpose.msra.mxu0 0.0
    %1094 = vmatprep.subr.mxu0 0.0
    %1095 = vmatpush1.xpose.msra.mxu0 0.0
    %1096 = vmatprep.subr.mxu0 0.0
    %1097 = vmatpush1.xpose.msra.mxu0 0.0
    %1098 = vmatprep.subr.mxu0 0.0
    %1099 = vmatpush1.xpose.msra.mxu0 0.0
    %1100 = vmatprep.subr.mxu0 0.0
    %1101 = vmatpush1.xpose.msra.mxu0 0.0
    %1102 = vmatprep.subr.mxu0 0.0
    %1103 = vmatpush1.xpose.msra.mxu0 0.0
    %1104 = vmatprep.subr.mxu0 0.0
    %1105 = vmatpush1.xpose.msra.mxu0 0.0
    %1106 = vmatprep.subr.mxu0 0.0
    %1107 = vmatpush1.xpose.msra.mxu0 0.0
    %1108 = vmatprep.subr.mxu0 0.0
    %1109 = vmatpush1.xpose.msra.mxu0 0.0
    %1110 = vmatprep.subr.mxu0 0.0
    %1111 = vmatpush1.xpose.msra.mxu0 0.0
    %1112 = vmatprep.subr.mxu0 0.0
    %1113 = vmatpush1.xpose.msra.mxu0 0.0
    %1114 = vmatprep.subr.mxu0 0.0
    %1115 = vmatpush1.xpose.msra.mxu0 0.0
    %1116 = vmatprep.subr.mxu0 0.0
    %1117 = vmatpush1.xpose.msra.mxu0 0.0
    %1118 = vmatprep.subr.mxu0 0.0
    %1119 = vmatpush1.xpose.msra.mxu0 0.0
    %1120 = vmatprep.subr.mxu0 0.0
    %1121 = vmatpush1.xpose.msra.mxu0 0.0
    %1122 = vmatprep.subr.mxu0 0.0
    %1123 = vmatpush1.xpose.msra.mxu0 0.0
    %1124 = vmatprep.subr.mxu0 0.0
    %1125 = vmatpush1.xpose.msra.mxu0 0.0
    %1126 = vmatprep.subr.mxu0 0.0
    %1127 = vmatpush1.xpose.msra.mxu0 0.0
    %1128 = vmatprep.subr.mxu0 0.0
    %1129 = vmatpush1.xpose.msra.mxu0 0.0
    %1130 = vmatprep.subr.mxu0 0.0
    %1131 = vmatpush1.xpose.msra.mxu0 0.0
    %1132 = vmatprep.subr.mxu0 0.0
    %1133 = vmatpush1.xpose.msra.mxu0 0.0
    %1134 = vmatprep.subr.mxu0 0.0
    %1135 = vmatpush1.xpose.msra.mxu0 0.0
    %1136 = vmatprep.subr.mxu0 0.0
    %1137 = vmatpush1.xpose.msra.mxu0 0.0
    %1138 = vmatprep.subr.mxu0 0.0
    %1139 = vmatpush1.xpose.msra.mxu0 0.0
    %1140 = vmatprep.subr.mxu0 0.0
    %1141 = vmatpush1.xpose.msra.mxu0 0.0
    %1142 = vmatprep.subr.mxu0 0.0
    %1143 = vmatpush1.xpose.msra.mxu0 0.0
    %1144 = vmatprep.subr.mxu0 0.0
    %1145 = vmatpush1.xpose.msra.mxu0 0.0
    %1146 = vmatprep.subr.mxu0 0.0
    %1147 = vmatpush1.xpose.msra.mxu0 0.0
    %1148 = vmatprep.subr.mxu0 0.0
    %1149 = vmatpush1.xpose.msra.mxu0 0.0
    %1150 = vmatprep.subr.mxu0 0.0
    %1151 = vmatpush1.xpose.msra.mxu0 0.0
    %1152 = vmatprep.subr.mxu0 0.0
    %1153 = vmatpush1.xpose.msra.mxu0 0.0
    %1154 = vmatprep.mubr.f32.mxu0 0.0
    %1155 = vmatmul.mubr.f32.gmra.mrb[0].mxu0 %v1086
    %v1156 = vpop.f32.mrb[0].mxu0
    %v1157 = vadd.f32 0.0, %v1156
    %v1158 = vpop.f32.mrb[0].mxu0
    %1159 = vdwg.mxu0
    %v1160 = vsel %vm329, %v1079, -3.4028235e+38
    %v1161 = vsel %vm329, %v1157, -3.4028235e+38
    %v1162 = vsel %vm176, %v1160, -inf
    %1163 = vmax.xlane.f32.xlu0 %v1162
    %v1164 = vpop.xlane.xlu0 %1163
    %v1165 = vsel %vm176, %v1161, -inf
    %1166 = vmax.xlane.f32.xlu0 %v1165
    %v1167 = vpop.xlane.xlu0 %1166
    %v1168 = vsub.f32 %v1160, %v1164
    %v1169 = vsub.f32 %v1161, %v1167
    %v1170 = vmul.f32 %v1168, 1.442695
    %v1171 = vpow.pop %v1170
    %v1172 = vmul.f32 %v1169, 1.442695
    %v1173 = vpow.pop %v1172
    %v1174 = vsel %vm176, %v1171, 0.0
    %1175 = vadd.xlane.f32.xlu0 %v1174
    %v1176 = vpop.xlane.xlu0 %1175
    %v1177 = vsel %vm176, %v1173, 0.0
    %1178 = vadd.xlane.f32.xlu0 %v1177
    %v1179 = vpop.xlane.xlu0 %1178
    %v1180 = vrcp.pop %v1176
    %v1181 = vrcp.pop %v1179
    %v1182 = vmul.f32 %v1171, %v1180
    %v1183 = vmul.f32 %v1173, %v1181
    %1184 = vrot.lane.b32.xlu0 %v149, 48
    %v1185 = vpop.permute.xlu0 %1184
    %v1188 = vsel %vm176, %v1182, 0
    %1190 = vmatprep.subr.mxu0 0.0
    %1191 = vmatpush1.msra.mxu0 %v1185
    %1192 = vmatprep.subr.mxu0 0.0
    %1193 = vmatpush1.msra.mxu0 0.0
    %1194 = vmatprep.subr.mxu0 0.0
    %1195 = vmatpush1.msra.mxu0 0.0
    %1196 = vmatprep.subr.mxu0 0.0
    %1197 = vmatpush1.msra.mxu0 0.0
    %1198 = vmatprep.subr.mxu0 0.0
    %1199 = vmatpush1.msra.mxu0 0.0
    %1200 = vmatprep.subr.mxu0 0.0
    %1201 = vmatpush1.msra.mxu0 0.0
    %1202 = vmatprep.subr.mxu0 0.0
    %1203 = vmatpush1.msra.mxu0 0.0
    %1204 = vmatprep.subr.mxu0 0.0
    %1205 = vmatpush1.msra.mxu0 0.0
    %1206 = vmatprep.subr.mxu0 0.0
    %1207 = vmatpush1.msra.mxu0 0.0
    %1208 = vmatprep.subr.mxu0 0.0
    %1209 = vmatpush1.msra.mxu0 0.0
    %1210 = vmatprep.subr.mxu0 0.0
    %1211 = vmatpush1.msra.mxu0 0.0
    %1212 = vmatprep.subr.mxu0 0.0
    %1213 = vmatpush1.msra.mxu0 0.0
    %1214 = vmatprep.subr.mxu0 0.0
    %1215 = vmatpush1.msra.mxu0 0.0
    %1216 = vmatprep.subr.mxu0 0.0
    %1217 = vmatpush1.msra.mxu0 0.0
    %1218 = vmatprep.subr.mxu0 0.0
    %1219 = vmatpush1.msra.mxu0 0.0
    %1220 = vmatprep.subr.mxu0 0.0
    %1221 = vmatpush1.msra.mxu0 0.0
    %1222 = vmatprep.subr.mxu0 0.0
    %1223 = vmatpush1.msra.mxu0 0.0
    %1224 = vmatprep.subr.mxu0 0.0
    %1225 = vmatpush1.msra.mxu0 0.0
    %1226 = vmatprep.subr.mxu0 0.0
    %1227 = vmatpush1.msra.mxu0 0.0
    %1228 = vmatprep.subr.mxu0 0.0
    %1229 = vmatpush1.msra.mxu0 0.0
    %1230 = vmatprep.subr.mxu0 0.0
    %1231 = vmatpush1.msra.mxu0 0.0
    %1232 = vmatprep.subr.mxu0 0.0
    %1233 = vmatpush1.msra.mxu0 0.0
    %1234 = vmatprep.subr.mxu0 0.0
    %1235 = vmatpush1.msra.mxu0 0.0
    %1236 = vmatprep.subr.mxu0 0.0
    %1237 = vmatpush1.msra.mxu0 0.0
    %1238 = vmatprep.subr.mxu0 0.0
    %1239 = vmatpush1.msra.mxu0 0.0
    %1240 = vmatprep.subr.mxu0 0.0
    %1241 = vmatpush1.msra.mxu0 0.0
    %1242 = vmatprep.subr.mxu0 0.0
    %1243 = vmatpush1.msra.mxu0 0.0
    %1244 = vmatprep.subr.mxu0 0.0
    %1245 = vmatpush1.msra.mxu0 0.0
    %1246 = vmatprep.subr.mxu0 0.0
    %1247 = vmatpush1.msra.mxu0 0.0
    %1248 = vmatprep.subr.mxu0 0.0
    %1249 = vmatpush1.msra.mxu0 0.0
    %1250 = vmatprep.subr.mxu0 0.0
    %1251 = vmatpush1.msra.mxu0 0.0
    %1252 = vmatprep.subr.mxu0 0.0
    %1253 = vmatpush1.msra.mxu0 0.0
    %1254 = vmatprep.mubr.f32.mxu0 0.0
    %1255 = vmatmul.mubr.f32.gmra.mrb[0].mxu0 %v1188
    %v1256 = vpop.f32.mrb[0].mxu0
    %v1257 = vadd.f32 0.0, %v1256
    %v1258 = vpop.f32.mrb[0].mxu0
    %1259 = vdwg.mxu0
    %1260 = vrot.lane.b32.xlu0 %v154, 48
    %v1261 = vpop.permute.xlu0 %1260
    %v1264 = vsel %vm176, %v1183, 0
    %1266 = vmatprep.subr.mxu0 0.0
    %1267 = vmatpush1.msra.mxu0 %v1261
    %1268 = vmatprep.subr.mxu0 0.0
    %1269 = vmatpush1.msra.mxu0 0.0
    %1270 = vmatprep.subr.mxu0 0.0
    %1271 = vmatpush1.msra.mxu0 0.0
    %1272 = vmatprep.subr.mxu0 0.0
    %1273 = vmatpush1.msra.mxu0 0.0
    %1274 = vmatprep.subr.mxu0 0.0
    %1275 = vmatpush1.msra.mxu0 0.0
    %1276 = vmatprep.subr.mxu0 0.0
    %1277 = vmatpush1.msra.mxu0 0.0
    %1278 = vmatprep.subr.mxu0 0.0
    %1279 = vmatpush1.msra.mxu0 0.0
    %1280 = vmatprep.subr.mxu0 0.0
    %1281 = vmatpush1.msra.mxu0 0.0
    %1282 = vmatprep.subr.mxu0 0.0
    %1283 = vmatpush1.msra.mxu0 0.0
    %1284 = vmatprep.subr.mxu0 0.0
    %1285 = vmatpush1.msra.mxu0 0.0
    %1286 = vmatprep.subr.mxu0 0.0
    %1287 = vmatpush1.msra.mxu0 0.0
    %1288 = vmatprep.subr.mxu0 0.0
    %1289 = vmatpush1.msra.mxu0 0.0
    %1290 = vmatprep.subr.mxu0 0.0
    %1291 = vmatpush1.msra.mxu0 0.0
    %1292 = vmatprep.subr.mxu0 0.0
    %1293 = vmatpush1.msra.mxu0 0.0
    %1294 = vmatprep.subr.mxu0 0.0
    %1295 = vmatpush1.msra.mxu0 0.0
    %1296 = vmatprep.subr.mxu0 0.0
    %1297 = vmatpush1.msra.mxu0 0.0
    %1298 = vmatprep.subr.mxu0 0.0
    %1299 = vmatpush1.msra.mxu0 0.0
    %1300 = vmatprep.subr.mxu0 0.0
    %1301 = vmatpush1.msra.mxu0 0.0
    %1302 = vmatprep.subr.mxu0 0.0
    %1303 = vmatpush1.msra.mxu0 0.0
    %1304 = vmatprep.subr.mxu0 0.0
    %1305 = vmatpush1.msra.mxu0 0.0
    %1306 = vmatprep.subr.mxu0 0.0
    %1307 = vmatpush1.msra.mxu0 0.0
    %1308 = vmatprep.subr.mxu0 0.0
    %1309 = vmatpush1.msra.mxu0 0.0
    %1310 = vmatprep.subr.mxu0 0.0
    %1311 = vmatpush1.msra.mxu0 0.0
    %1312 = vmatprep.subr.mxu0 0.0
    %1313 = vmatpush1.msra.mxu0 0.0
    %1314 = vmatprep.subr.mxu0 0.0
    %1315 = vmatpush1.msra.mxu0 0.0
    %1316 = vmatprep.subr.mxu0 0.0
    %1317 = vmatpush1.msra.mxu0 0.0
    %1318 = vmatprep.subr.mxu0 0.0
    %1319 = vmatpush1.msra.mxu0 0.0
    %1320 = vmatprep.subr.mxu0 0.0
    %1321 = vmatpush1.msra.mxu0 0.0
    %1322 = vmatprep.subr.mxu0 0.0
    %1323 = vmatpush1.msra.mxu0 0.0
    %1324 = vmatprep.subr.mxu0 0.0
    %1325 = vmatpush1.msra.mxu0 0.0
    %1326 = vmatprep.subr.mxu0 0.0
    %1327 = vmatpush1.msra.mxu0 0.0
    %1328 = vmatprep.subr.mxu0 0.0
    %1329 = vmatpush1.msra.mxu0 0.0
    %1330 = vmatprep.mubr.f32.mxu0 0.0
    %1331 = vmatmul.mubr.f32.gmra.mrb[0].mxu0 %v1264
    %v1332 = vpop.f32.mrb[0].mxu0
    %v1333 = vadd.f32 0.0, %v1332
    %v1334 = vpop.f32.mrb[0].mxu0
    %1335 = vdwg.mxu0
    %v1337 = vsel %vm176, %v1257, 0
    %v1340 = vsel %vm176, %v1333, 0
    %1342 = vmatprep.subr.mxu0 0.0
    %1343 = vmatpush1.msra.mxu0 %v164
    %1344 = vmatprep.subr.mxu0 0.0
    %1345 = vmatpush1.msra.mxu0 0.0
    %1346 = vmatprep.subr.mxu0 0.0
    %1347 = vmatpush1.msra.mxu0 0.0
    %1348 = vmatprep.subr.mxu0 0.0
    %1349 = vmatpush1.msra.mxu0 0.0
    %1350 = vmatprep.subr.mxu0 0.0
    %1351 = vmatpush1.msra.mxu0 0.0
    %1352 = vmatprep.subr.mxu0 0.0
    %1353 = vmatpush1.msra.mxu0 0.0
    %1354 = vmatprep.subr.mxu0 0.0
    %1355 = vmatpush1.msra.mxu0 0.0
    %1356 = vmatprep.subr.mxu0 0.0
    %1357 = vmatpush1.msra.mxu0 0.0
    %1358 = vmatprep.subr.mxu0 0.0
    %1359 = vmatpush1.msra.mxu0 0.0
    %1360 = vmatprep.subr.mxu0 0.0
    %1361 = vmatpush1.msra.mxu0 0.0
    %1362 = vmatprep.subr.mxu0 0.0
    %1363 = vmatpush1.msra.mxu0 0.0
    %1364 = vmatprep.subr.mxu0 0.0
    %1365 = vmatpush1.msra.mxu0 0.0
    %1366 = vmatprep.subr.mxu0 0.0
    %1367 = vmatpush1.msra.mxu0 0.0
    %1368 = vmatprep.subr.mxu0 0.0
    %1369 = vmatpush1.msra.mxu0 0.0
    %1370 = vmatprep.subr.mxu0 0.0
    %1371 = vmatpush1.msra.mxu0 0.0
    %1372 = vmatprep.subr.mxu0 0.0
    %1373 = vmatpush1.msra.mxu0 0.0
    %1374 = vmatprep.subr.mxu0 0.0
    %1375 = vmatpush1.msra.mxu0 0.0
    %1376 = vmatprep.subr.mxu0 0.0
    %1377 = vmatpush1.msra.mxu0 0.0
    %1378 = vmatprep.subr.mxu0 0.0
    %1379 = vmatpush1.msra.mxu0 0.0
    %1380 = vmatprep.subr.mxu0 0.0
    %1381 = vmatpush1.msra.mxu0 0.0
    %1382 = vmatprep.subr.mxu0 0.0
    %1383 = vmatpush1.msra.mxu0 0.0
    %1384 = vmatprep.subr.mxu0 0.0
    %1385 = vmatpush1.msra.mxu0 0.0
    %1386 = vmatprep.subr.mxu0 0.0
    %1387 = vmatpush1.msra.mxu0 0.0
    %1388 = vmatprep.subr.mxu0 0.0
    %1389 = vmatpush1.msra.mxu0 0.0
    %1390 = vmatprep.subr.mxu0 0.0
    %1391 = vmatpush1.msra.mxu0 0.0
    %1392 = vmatprep.subr.mxu0 0.0
    %1393 = vmatpush1.msra.mxu0 0.0
    %1394 = vmatprep.subr.mxu0 0.0
    %1395 = vmatpush1.msra.mxu0 0.0
    %1396 = vmatprep.subr.mxu0 0.0
    %1397 = vmatpush1.msra.mxu0 0.0
    %1398 = vmatprep.subr.mxu0 0.0
    %1399 = vmatpush1.msra.mxu0 0.0
    %1400 = vmatprep.subr.mxu0 0.0
    %1401 = vmatpush1.msra.mxu0 0.0
    %1402 = vmatprep.subr.mxu0 0.0
    %1403 = vmatpush1.msra.mxu0 0.0
    %1404 = vmatprep.subr.mxu0 0.0
    %1405 = vmatpush1.msra.mxu0 0.0
    %1406 = vmatprep.mubr.f32.mxu0 0.0
    %1407 = vmatmul.mubr.f32.gmra.mrb[0].mxu0 %v1337
    %v1408 = vpop.f32.mrb[0].mxu0
    %v1409 = vadd.f32 0.0, %v1408
    %v1410 = vpop.f32.mrb[0].mxu0
    %1411 = vmatprep.mubr.f32.mxu0 0.0
    %1412 = vmatmul.mubr.f32.gmra.mrb[0].mxu0 %v1340
    %v1413 = vpop.f32.mrb[0].mxu0
    %v1414 = vadd.f32 0.0, %v1413
    %v1415 = vpop.f32.mrb[0].mxu0
    %1416 = vdwg.mxu0
    %v1417 = vadd.f32 %v1002, %v1409
    %v1418 = vadd.f32 %v1003, %v1414
    %1419 = vrot.lane.b32.xlu0 %v149, 104
    %v1420 = vpop.permute.xlu0 %1419
    %1421 = vrot.lane.b32.xlu0 %v149, 72
    %v1422 = vpop.permute.xlu0 %1421
    %v1423 = vsel %vm176, %v1420, 0
    %v1425 = vsel %vm176, %v1422, 0
    %1427 = vmatprep.subr.mxu0 0.0
    %1428 = vmatpush1.xpose.msra.mxu0 %v1425
    %1429 = vmatprep.subr.mxu0 0.0
    %1430 = vmatpush1.xpose.msra.mxu0 0.0
    %1431 = vmatprep.subr.mxu0 0.0
    %1432 = vmatpush1.xpose.msra.mxu0 0.0
    %1433 = vmatprep.subr.mxu0 0.0
    %1434 = vmatpush1.xpose.msra.mxu0 0.0
    %1435 = vmatprep.subr.mxu0 0.0
    %1436 = vmatpush1.xpose.msra.mxu0 0.0
    %1437 = vmatprep.subr.mxu0 0.0
    %1438 = vmatpush1.xpose.msra.mxu0 0.0
    %1439 = vmatprep.subr.mxu0 0.0
    %1440 = vmatpush1.xpose.msra.mxu0 0.0
    %1441 = vmatprep.subr.mxu0 0.0
    %1442 = vmatpush1.xpose.msra.mxu0 0.0
    %1443 = vmatprep.subr.mxu0 0.0
    %1444 = vmatpush1.xpose.msra.mxu0 0.0
    %1445 = vmatprep.subr.mxu0 0.0
    %1446 = vmatpush1.xpose.msra.mxu0 0.0
    %1447 = vmatprep.subr.mxu0 0.0
    %1448 = vmatpush1.xpose.msra.mxu0 0.0
    %1449 = vmatprep.subr.mxu0 0.0
    %1450 = vmatpush1.xpose.msra.mxu0 0.0
    %1451 = vmatprep.subr.mxu0 0.0
    %1452 = vmatpush1.xpose.msra.mxu0 0.0
    %1453 = vmatprep.subr.mxu0 0.0
    %1454 = vmatpush1.xpose.msra.mxu0 0.0
    %1455 = vmatprep.subr.mxu0 0.0
    %1456 = vmatpush1.xpose.msra.mxu0 0.0
    %1457 = vmatprep.subr.mxu0 0.0
    %1458 = vmatpush1.xpose.msra.mxu0 0.0
    %1459 = vmatprep.subr.mxu0 0.0
    %1460 = vmatpush1.xpose.msra.mxu0 0.0
    %1461 = vmatprep.subr.mxu0 0.0
    %1462 = vmatpush1.xpose.msra.mxu0 0.0
    %1463 = vmatprep.subr.mxu0 0.0
    %1464 = vmatpush1.xpose.msra.mxu0 0.0
    %1465 = vmatprep.subr.mxu0 0.0
    %1466 = vmatpush1.xpose.msra.mxu0 0.0
    %1467 = vmatprep.subr.mxu0 0.0
    %1468 = vmatpush1.xpose.msra.mxu0 0.0
    %1469 = vmatprep.subr.mxu0 0.0
    %1470 = vmatpush1.xpose.msra.mxu0 0.0
    %1471 = vmatprep.subr.mxu0 0.0
    %1472 = vmatpush1.xpose.msra.mxu0 0.0
    %1473 = vmatprep.subr.mxu0 0.0
    %1474 = vmatpush1.xpose.msra.mxu0 0.0
    %1475 = vmatprep.subr.mxu0 0.0
    %1476 = vmatpush1.xpose.msra.mxu0 0.0
    %1477 = vmatprep.subr.mxu0 0.0
    %1478 = vmatpush1.xpose.msra.mxu0 0.0
    %1479 = vmatprep.subr.mxu0 0.0
    %1480 = vmatpush1.xpose.msra.mxu0 0.0
    %1481 = vmatprep.subr.mxu0 0.0
    %1482 = vmatpush1.xpose.msra.mxu0 0.0
    %1483 = vmatprep.subr.mxu0 0.0
    %1484 = vmatpush1.xpose.msra.mxu0 0.0
    %1485 = vmatprep.subr.mxu0 0.0
    %1486 = vmatpush1.xpose.msra.mxu0 0.0
    %1487 = vmatprep.subr.mxu0 0.0
    %1488 = vmatpush1.xpose.msra.mxu0 0.0
    %1489 = vmatprep.subr.mxu0 0.0
    %1490 = vmatpush1.xpose.msra.mxu0 0.0
    %1491 = vmatprep.mubr.f32.mxu0 0.0
    %1492 = vmatmul.mubr.f32.gmra.mrb[0].mxu0 %v1423
    %v1493 = vpop.f32.mrb[0].mxu0
    %v1494 = vadd.f32 0.0, %v1493
    %v1495 = vpop.f32.mrb[0].mxu0
    %1496 = vdwg.mxu0
    %1497 = vrot.lane.b32.xlu0 %v154, 104
    %v1498 = vpop.permute.xlu0 %1497
    %1499 = vrot.lane.b32.xlu0 %v154, 72
    %v1500 = vpop.permute.xlu0 %1499
    %v1501 = vsel %vm176, %v1498, 0
    %v1503 = vsel %vm176, %v1500, 0
    %1505 = vmatprep.subr.mxu0 0.0
    %1506 = vmatpush1.xpose.msra.mxu0 %v1503
    %1507 = vmatprep.subr.mxu0 0.0
    %1508 = vmatpush1.xpose.msra.mxu0 0.0
    %1509 = vmatprep.subr.mxu0 0.0
    %1510 = vmatpush1.xpose.msra.mxu0 0.0
    %1511 = vmatprep.subr.mxu0 0.0
    %1512 = vmatpush1.xpose.msra.mxu0 0.0
    %1513 = vmatprep.subr.mxu0 0.0
    %1514 = vmatpush1.xpose.msra.mxu0 0.0
    %1515 = vmatprep.subr.mxu0 0.0
    %1516 = vmatpush1.xpose.msra.mxu0 0.0
    %1517 = vmatprep.subr.mxu0 0.0
    %1518 = vmatpush1.xpose.msra.mxu0 0.0
    %1519 = vmatprep.subr.mxu0 0.0
    %1520 = vmatpush1.xpose.msra.mxu0 0.0
    %1521 = vmatprep.subr.mxu0 0.0
    %1522 = vmatpush1.xpose.msra.mxu0 0.0
    %1523 = vmatprep.subr.mxu0 0.0
    %1524 = vmatpush1.xpose.msra.mxu0 0.0
    %1525 = vmatprep.subr.mxu0 0.0
    %1526 = vmatpush1.xpose.msra.mxu0 0.0
    %1527 = vmatprep.subr.mxu0 0.0
    %1528 = vmatpush1.xpose.msra.mxu0 0.0
    %1529 = vmatprep.subr.mxu0 0.0
    %1530 = vmatpush1.xpose.msra.mxu0 0.0
    %1531 = vmatprep.subr.mxu0 0.0
    %1532 = vmatpush1.xpose.msra.mxu0 0.0
    %1533 = vmatprep.subr.mxu0 0.0
    %1534 = vmatpush1.xpose.msra.mxu0 0.0
    %1535 = vmatprep.subr.mxu0 0.0
    %1536 = vmatpush1.xpose.msra.mxu0 0.0
    %1537 = vmatprep.subr.mxu0 0.0
    %1538 = vmatpush1.xpose.msra.mxu0 0.0
    %1539 = vmatprep.subr.mxu0 0.0
    %1540 = vmatpush1.xpose.msra.mxu0 0.0
    %1541 = vmatprep.subr.mxu0 0.0
    %1542 = vmatpush1.xpose.msra.mxu0 0.0
    %1543 = vmatprep.subr.mxu0 0.0
    %1544 = vmatpush1.xpose.msra.mxu0 0.0
    %1545 = vmatprep.subr.mxu0 0.0
    %1546 = vmatpush1.xpose.msra.mxu0 0.0
    %1547 = vmatprep.subr.mxu0 0.0
    %1548 = vmatpush1.xpose.msra.mxu0 0.0
    %1549 = vmatprep.subr.mxu0 0.0
    %1550 = vmatpush1.xpose.msra.mxu0 0.0
    %1551 = vmatprep.subr.mxu0 0.0
    %1552 = vmatpush1.xpose.msra.mxu0 0.0
    %1553 = vmatprep.subr.mxu0 0.0
    %1554 = vmatpush1.xpose.msra.mxu0 0.0
    %1555 = vmatprep.subr.mxu0 0.0
    %1556 = vmatpush1.xpose.msra.mxu0 0.0
    %1557 = vmatprep.subr.mxu0 0.0
    %1558 = vmatpush1.xpose.msra.mxu0 0.0
    %1559 = vmatprep.subr.mxu0 0.0
    %1560 = vmatpush1.xpose.msra.mxu0 0.0
    %1561 = vmatprep.subr.mxu0 0.0
    %1562 = vmatpush1.xpose.msra.mxu0 0.0
    %1563 = vmatprep.subr.mxu0 0.0
    %1564 = vmatpush1.xpose.msra.mxu0 0.0
    %1565 = vmatprep.subr.mxu0 0.0
    %1566 = vmatpush1.xpose.msra.mxu0 0.0
    %1567 = vmatprep.subr.mxu0 0.0
    %1568 = vmatpush1.xpose.msra.mxu0 0.0
    %1569 = vmatprep.mubr.f32.mxu0 0.0
    %1570 = vmatmul.mubr.f32.gmra.mrb[0].mxu0 %v1501
    %v1571 = vpop.f32.mrb[0].mxu0
    %v1572 = vadd.f32 0.0, %v1571
    %v1573 = vpop.f32.mrb[0].mxu0
    %1574 = vdwg.mxu0
    %v1575 = vsel %vm329, %v1494, -3.4028235e+38
    %v1576 = vsel %vm329, %v1572, -3.4028235e+38
    %v1577 = vsel %vm176, %v1575, -inf
    %1578 = vmax.xlane.f32.xlu0 %v1577
    %v1579 = vpop.xlane.xlu0 %1578
    %v1580 = vsel %vm176, %v1576, -inf
    %1581 = vmax.xlane.f32.xlu0 %v1580
    %v1582 = vpop.xlane.xlu0 %1581
    %v1583 = vsub.f32 %v1575, %v1579
    %v1584 = vsub.f32 %v1576, %v1582
    %v1585 = vmul.f32 %v1583, 1.442695
    %v1586 = vpow.pop %v1585
    %v1587 = vmul.f32 %v1584, 1.442695
    %v1588 = vpow.pop %v1587
    %v1589 = vsel %vm176, %v1586, 0.0
    %1590 = vadd.xlane.f32.xlu0 %v1589
    %v1591 = vpop.xlane.xlu0 %1590
    %v1592 = vsel %vm176, %v1588, 0.0
    %1593 = vadd.xlane.f32.xlu0 %v1592
    %v1594 = vpop.xlane.xlu0 %1593
    %v1595 = vrcp.pop %v1591
    %v1596 = vrcp.pop %v1594
    %v1597 = vmul.f32 %v1586, %v1595
    %v1598 = vmul.f32 %v1588, %v1596
    %1599 = vrot.lane.b32.xlu0 %v149, 40
    %v1600 = vpop.permute.xlu0 %1599
    %v1603 = vsel %vm176, %v1597, 0
    %1605 = vmatprep.subr.mxu0 0.0
    %1606 = vmatpush1.msra.mxu0 %v1600
    %1607 = vmatprep.subr.mxu0 0.0
    %1608 = vmatpush1.msra.mxu0 0.0
    %1609 = vmatprep.subr.mxu0 0.0
    %1610 = vmatpush1.msra.mxu0 0.0
    %1611 = vmatprep.subr.mxu0 0.0
    %1612 = vmatpush1.msra.mxu0 0.0
    %1613 = vmatprep.subr.mxu0 0.0
    %1614 = vmatpush1.msra.mxu0 0.0
    %1615 = vmatprep.subr.mxu0 0.0
    %1616 = vmatpush1.msra.mxu0 0.0
    %1617 = vmatprep.subr.mxu0 0.0
    %1618 = vmatpush1.msra.mxu0 0.0
    %1619 = vmatprep.subr.mxu0 0.0
    %1620 = vmatpush1.msra.mxu0 0.0
    %1621 = vmatprep.subr.mxu0 0.0
    %1622 = vmatpush1.msra.mxu0 0.0
    %1623 = vmatprep.subr.mxu0 0.0
    %1624 = vmatpush1.msra.mxu0 0.0
    %1625 = vmatprep.subr.mxu0 0.0
    %1626 = vmatpush1.msra.mxu0 0.0
    %1627 = vmatprep.subr.mxu0 0.0
    %1628 = vmatpush1.msra.mxu0 0.0
    %1629 = vmatprep.subr.mxu0 0.0
    %1630 = vmatpush1.msra.mxu0 0.0
    %1631 = vmatprep.subr.mxu0 0.0
    %1632 = vmatpush1.msra.mxu0 0.0
    %1633 = vmatprep.subr.mxu0 0.0
    %1634 = vmatpush1.msra.mxu0 0.0
    %1635 = vmatprep.subr.mxu0 0.0
    %1636 = vmatpush1.msra.mxu0 0.0
    %1637 = vmatprep.subr.mxu0 0.0
    %1638 = vmatpush1.msra.mxu0 0.0
    %1639 = vmatprep.subr.mxu0 0.0
    %1640 = vmatpush1.msra.mxu0 0.0
    %1641 = vmatprep.subr.mxu0 0.0
    %1642 = vmatpush1.msra.mxu0 0.0
    %1643 = vmatprep.subr.mxu0 0.0
    %1644 = vmatpush1.msra.mxu0 0.0
    %1645 = vmatprep.subr.mxu0 0.0
    %1646 = vmatpush1.msra.mxu0 0.0
    %1647 = vmatprep.subr.mxu0 0.0
    %1648 = vmatpush1.msra.mxu0 0.0
    %1649 = vmatprep.subr.mxu0 0.0
    %1650 = vmatpush1.msra.mxu0 0.0
    %1651 = vmatprep.subr.mxu0 0.0
    %1652 = vmatpush1.msra.mxu0 0.0
    %1653 = vmatprep.subr.mxu0 0.0
    %1654 = vmatpush1.msra.mxu0 0.0
    %1655 = vmatprep.subr.mxu0 0.0
    %1656 = vmatpush1.msra.mxu0 0.0
    %1657 = vmatprep.subr.mxu0 0.0
    %1658 = vmatpush1.msra.mxu0 0.0
    %1659 = vmatprep.subr.mxu0 0.0
    %1660 = vmatpush1.msra.mxu0 0.0
    %1661 = vmatprep.subr.mxu0 0.0
    %1662 = vmatpush1.msra.mxu0 0.0
    %1663 = vmatprep.subr.mxu0 0.0
    %1664 = vmatpush1.msra.mxu0 0.0
    %1665 = vmatprep.subr.mxu0 0.0
    %1666 = vmatpush1.msra.mxu0 0.0
    %1667 = vmatprep.subr.mxu0 0.0
    %1668 = vmatpush1.msra.mxu0 0.0
    %1669 = vmatprep.mubr.f32.mxu0 0.0
    %1670 = vmatmul.mubr.f32.gmra.mrb[0].mxu0 %v1603
    %v1671 = vpop.f32.mrb[0].mxu0
    %v1672 = vadd.f32 0.0, %v1671
    %v1673 = vpop.f32.mrb[0].mxu0
    %1674 = vdwg.mxu0
    %1675 = vrot.lane.b32.xlu0 %v154, 40
    %v1676 = vpop.permute.xlu0 %1675
    %v1679 = vsel %vm176, %v1598, 0
    %1681 = vmatprep.subr.mxu0 0.0
    %1682 = vmatpush1.msra.mxu0 %v1676
    %1683 = vmatprep.subr.mxu0 0.0
    %1684 = vmatpush1.msra.mxu0 0.0
    %1685 = vmatprep.subr.mxu0 0.0
    %1686 = vmatpush1.msra.mxu0 0.0
    %1687 = vmatprep.subr.mxu0 0.0
    %1688 = vmatpush1.msra.mxu0 0.0
    %1689 = vmatprep.subr.mxu0 0.0
    %1690 = vmatpush1.msra.mxu0 0.0
    %1691 = vmatprep.subr.mxu0 0.0
    %1692 = vmatpush1.msra.mxu0 0.0
    %1693 = vmatprep.subr.mxu0 0.0
    %1694 = vmatpush1.msra.mxu0 0.0
    %1695 = vmatprep.subr.mxu0 0.0
    %1696 = vmatpush1.msra.mxu0 0.0
    %1697 = vmatprep.subr.mxu0 0.0
    %1698 = vmatpush1.msra.mxu0 0.0
    %1699 = vmatprep.subr.mxu0 0.0
    %1700 = vmatpush1.msra.mxu0 0.0
    %1701 = vmatprep.subr.mxu0 0.0
    %1702 = vmatpush1.msra.mxu0 0.0
    %1703 = vmatprep.subr.mxu0 0.0
    %1704 = vmatpush1.msra.mxu0 0.0
    %1705 = vmatprep.subr.mxu0 0.0
    %1706 = vmatpush1.msra.mxu0 0.0
    %1707 = vmatprep.subr.mxu0 0.0
    %1708 = vmatpush1.msra.mxu0 0.0
    %1709 = vmatprep.subr.mxu0 0.0
    %1710 = vmatpush1.msra.mxu0 0.0
    %1711 = vmatprep.subr.mxu0 0.0
    %1712 = vmatpush1.msra.mxu0 0.0
    %1713 = vmatprep.subr.mxu0 0.0
    %1714 = vmatpush1.msra.mxu0 0.0
    %1715 = vmatprep.subr.mxu0 0.0
    %1716 = vmatpush1.msra.mxu0 0.0
    %1717 = vmatprep.subr.mxu0 0.0
    %1718 = vmatpush1.msra.mxu0 0.0
    %1719 = vmatprep.subr.mxu0 0.0
    %1720 = vmatpush1.msra.mxu0 0.0
    %1721 = vmatprep.subr.mxu0 0.0
    %1722 = vmatpush1.msra.mxu0 0.0
    %1723 = vmatprep.subr.mxu0 0.0
    %1724 = vmatpush1.msra.mxu0 0.0
    %1725 = vmatprep.subr.mxu0 0.0
    %1726 = vmatpush1.msra.mxu0 0.0
    %1727 = vmatprep.subr.mxu0 0.0
    %1728 = vmatpush1.msra.mxu0 0.0
    %1729 = vmatprep.subr.mxu0 0.0
    %1730 = vmatpush1.msra.mxu0 0.0
    %1731 = vmatprep.subr.mxu0 0.0
    %1732 = vmatpush1.msra.mxu0 0.0
    %1733 = vmatprep.subr.mxu0 0.0
    %1734 = vmatpush1.msra.mxu0 0.0
    %1735 = vmatprep.subr.mxu0 0.0
    %1736 = vmatpush1.msra.mxu0 0.0
    %1737 = vmatprep.subr.mxu0 0.0
    %1738 = vmatpush1.msra.mxu0 0.0
    %1739 = vmatprep.subr.mxu0 0.0
    %1740 = vmatpush1.msra.mxu0 0.0
    %1741 = vmatprep.subr.mxu0 0.0
    %1742 = vmatpush1.msra.mxu0 0.0
    %1743 = vmatprep.subr.mxu0 0.0
    %1744 = vmatpush1.msra.mxu0 0.0
    %1745 = vmatprep.mubr.f32.mxu0 0.0
    %1746 = vmatmul.mubr.f32.gmra.mrb[0].mxu0 %v1679
    %v1747 = vpop.f32.mrb[0].mxu0
    %v1748 = vadd.f32 0.0, %v1747
    %v1749 = vpop.f32.mrb[0].mxu0
    %1750 = vdwg.mxu0
    %v1752 = vsel %vm176, %v1672, 0
    %v1755 = vsel %vm176, %v1748, 0
    %1757 = vmatprep.subr.mxu0 0.0
    %1758 = vmatpush1.msra.mxu0 %v165
    %1759 = vmatprep.subr.mxu0 0.0
    %1760 = vmatpush1.msra.mxu0 0.0
    %1761 = vmatprep.subr.mxu0 0.0
    %1762 = vmatpush1.msra.mxu0 0.0
    %1763 = vmatprep.subr.mxu0 0.0
    %1764 = vmatpush1.msra.mxu0 0.0
    %1765 = vmatprep.subr.mxu0 0.0
    %1766 = vmatpush1.msra.mxu0 0.0
    %1767 = vmatprep.subr.mxu0 0.0
    %1768 = vmatpush1.msra.mxu0 0.0
    %1769 = vmatprep.subr.mxu0 0.0
    %1770 = vmatpush1.msra.mxu0 0.0
    %1771 = vmatprep.subr.mxu0 0.0
    %1772 = vmatpush1.msra.mxu0 0.0
    %1773 = vmatprep.subr.mxu0 0.0
    %1774 = vmatpush1.msra.mxu0 0.0
    %1775 = vmatprep.subr.mxu0 0.0
    %1776 = vmatpush1.msra.mxu0 0.0
    %1777 = vmatprep.subr.mxu0 0.0
    %1778 = vmatpush1.msra.mxu0 0.0
    %1779 = vmatprep.subr.mxu0 0.0
    %1780 = vmatpush1.msra.mxu0 0.0
    %1781 = vmatprep.subr.mxu0 0.0
    %1782 = vmatpush1.msra.mxu0 0.0
    %1783 = vmatprep.subr.mxu0 0.0
    %1784 = vmatpush1.msra.mxu0 0.0
    %1785 = vmatprep.subr.mxu0 0.0
    %1786 = vmatpush1.msra.mxu0 0.0
    %1787 = vmatprep.subr.mxu0 0.0
    %1788 = vmatpush1.msra.mxu0 0.0
    %1789 = vmatprep.subr.mxu0 0.0
    %1790 = vmatpush1.msra.mxu0 0.0
    %1791 = vmatprep.subr.mxu0 0.0
    %1792 = vmatpush1.msra.mxu0 0.0
    %1793 = vmatprep.subr.mxu0 0.0
    %1794 = vmatpush1.msra.mxu0 0.0
    %1795 = vmatprep.subr.mxu0 0.0
    %1796 = vmatpush1.msra.mxu0 0.0
    %1797 = vmatprep.subr.mxu0 0.0
    %1798 = vmatpush1.msra.mxu0 0.0
    %1799 = vmatprep.subr.mxu0 0.0
    %1800 = vmatpush1.msra.mxu0 0.0
    %1801 = vmatprep.subr.mxu0 0.0
    %1802 = vmatpush1.msra.mxu0 0.0
    %1803 = vmatprep.subr.mxu0 0.0
    %1804 = vmatpush1.msra.mxu0 0.0
    %1805 = vmatprep.subr.mxu0 0.0
    %1806 = vmatpush1.msra.mxu0 0.0
    %1807 = vmatprep.subr.mxu0 0.0
    %1808 = vmatpush1.msra.mxu0 0.0
    %1809 = vmatprep.subr.mxu0 0.0
    %1810 = vmatpush1.msra.mxu0 0.0
    %1811 = vmatprep.subr.mxu0 0.0
    %1812 = vmatpush1.msra.mxu0 0.0
    %1813 = vmatprep.subr.mxu0 0.0
    %1814 = vmatpush1.msra.mxu0 0.0
    %1815 = vmatprep.subr.mxu0 0.0
    %1816 = vmatpush1.msra.mxu0 0.0
    %1817 = vmatprep.subr.mxu0 0.0
    %1818 = vmatpush1.msra.mxu0 0.0
    %1819 = vmatprep.subr.mxu0 0.0
    %1820 = vmatpush1.msra.mxu0 0.0
    %1821 = vmatprep.mubr.f32.mxu0 0.0
    %1822 = vmatmul.mubr.f32.gmra.mrb[0].mxu0 %v1752
    %v1823 = vpop.f32.mrb[0].mxu0
    %v1824 = vadd.f32 0.0, %v1823
    %v1825 = vpop.f32.mrb[0].mxu0
    %1826 = vmatprep.mubr.f32.mxu0 0.0
    %1827 = vmatmul.mubr.f32.gmra.mrb[0].mxu0 %v1755
    %v1828 = vpop.f32.mrb[0].mxu0
    %v1829 = vadd.f32 0.0, %v1828
    %v1830 = vpop.f32.mrb[0].mxu0
    %1831 = vdwg.mxu0
    %v1832 = vadd.f32 %v1417, %v1824
    %v1833 = vadd.f32 %v1418, %v1829
    %1834 = vst.msk [vmem:[#allocation8] sm:$0xff] %vm75, %v1832
    %1835 = vst.msk [vmem:[#allocation8 + $0x8] sm:$0xff] %vm75, %v1833
    // Predicated region
    $region34: #{tpu_custom_call.1} parent=1 // pred_check
      _
    $region35: #{tpu_custom_call.1} parent=1 // pred_check_branch
      %1837 = sbr.rel (0) target = $region37
    $region36: #{tpu_custom_call.1} parent=1 // pred_region
      %s1839 = ssub.s32 256, 256
      %1840 = vsyncadd [#allocation4], %s1839
      %s1841 = sshll.u32 [#allocation8], 4
      %s1842 = int_to_ptr.vmem [resolvable:$true] %s1841
      %1847 = dma.vmem_to_hbm [thread:$0]  %s1842, 256, %s5, [#allocation4], 128, 128, 8
    $region37: #{tpu_custom_call.1} parent=1 // pred_fallthru
      _
    // Predicated region
    $region38: #{tpu_custom_call.1} parent=1 // pred_check
      _
    $region39: #{tpu_custom_call.1} parent=1 // pred_check_branch
      %1849 = sbr.rel (0) target = $region41
    $region40: #{tpu_custom_call.1} parent=1 // pred_region
      %1850 = dma.done [#allocation4], 256
    $region41: #{tpu_custom_call.1} parent=1 // pred_fallthru
      _
    %1851 = vsyncpa [#allocation3], 1
    %1852 = vsyncpa [#allocation6], 1
    %1853 = vsyncpa [#allocation4], 1

</llo_original>
